<compile_context>
chip_gen: v5e
topology: v5e:2x2
jax: 0.10.0
libtpu: 0.0.40
codegen_flags: <defaults>
</compile_context>

<pallas_src>
import functools
import math

import jax
import jax.numpy as jnp
from jax import lax
from jax.experimental import pallas as pl
from jax.experimental.pallas import tpu as pltpu  # noqa: F401  (TPU backend)

# ---- small BERT-like config ----
VOCAB = 128
HIDDEN = 32
HEADS = 4
HEAD_DIM = HIDDEN // HEADS
FFN = 64
LAYERS = 2
MAX_POS = 16
EPS = 1e-12  # BERT LayerNorm eps


# TODO(synk): tokenizer (BertJapaneseTokenizer) and pretrained-checkpoint load
# are not translatable; input_ids / attention_mask are taken as inputs and
# weights are synthetic.


def _gelu(x):
    # HF BERT uses exact erf-gelu; tanh approximation is numerically ~identical
    # and lowers cleanly on the TPU EUP.
    c = jnp.float32(math.sqrt(2.0 / math.pi))
    return 0.5 * x * (1.0 + jnp.tanh(c * (x + 0.044715 * x * x * x)))


def _layernorm(h, g, b):
    mean = jnp.mean(h, axis=-1, keepdims=True)
    var = jnp.mean(jnp.square(h - mean), axis=-1, keepdims=True)
    inv = lax.rsqrt(var + EPS)
    return (h - mean) * inv * g + b


# ----------------------------------------------------------------------------
# Single fused encoder kernel
# ----------------------------------------------------------------------------
def encoder_kernel(emb_ref, maskb_ref,
                   emb_ln_g_ref, emb_ln_b_ref,
                   qkv_w_ref, qkv_b_ref,
                   ao_w_ref, ao_b_ref,
                   attn_ln_g_ref, attn_ln_b_ref,
                   ff_w1_ref, ff_b1_ref,
                   ff_w2_ref, ff_b2_ref,
                   ffn_ln_g_ref, ffn_ln_b_ref,
                   pool_w_ref, pool_b_ref,
                   hidden_ref, pool_ref,
                   *, batch, seq):
    # ---- embedding LayerNorm (LN-only; no zero residual) ----
    x = _layernorm(emb_ref[...], emb_ln_g_ref[...], emb_ln_b_ref[...])

    # ---- transformer layers (static unrolled loop, LAYERS=2) ----
    for l in range(LAYERS):
        # Fused QKV projection: one MXU pass, lane-dense (B*S, 3*HIDDEN) slab.
        # Note: 1/sqrt(head_dim) is already folded into the Q slice of the
        # fused weight/bias at pack time.
        qkv = (jnp.dot(x, qkv_w_ref[l], preferred_element_type=jnp.float32)
               + qkv_b_ref[l])

        # Attention: static loops over batch & heads; head slices are
        # contiguous on the lane axis (free slicing, no transposes).
        ctx_rows = []
        for b in range(batch):
            rows = slice(b * seq, (b + 1) * seq)
            bias = maskb_ref[b]                      # (1, seq) additive bias
            head_ctx = []
            for h in range(HEADS):
                q = qkv[rows, h * HEAD_DIM:(h + 1) * HEAD_DIM]
                k = qkv[rows, HIDDEN + h * HEAD_DIM:HIDDEN + (h + 1) * HEAD_DIM]
                v = qkv[rows, 2 * HIDDEN + h * HEAD_DIM:
                              2 * HIDDEN + (h + 1) * HEAD_DIM]
                # q @ k^T via dot_general contracting last dims (MXU-fed
                # transpose, no explicit relayout of k).
                s = lax.dot_general(q, k, (((1,), (1,)), ((), ())),
                                    preferred_element_type=jnp.float32)
                s = s + bias                          # mask padded keys
                s_max = jnp.max(s, axis=-1, keepdims=True)
                p = jnp.exp(s - s_max)
                denom = jnp.sum(p, axis=-1, keepdims=True)
                p = p * pl.reciprocal(denom, approx=True)
                head_ctx.append(jnp.dot(p, v,
                                        preferred_element_type=jnp.float32))
            ctx_rows.append(jnp.concatenate(head_ctx, axis=-1))   # (seq, HIDDEN)
        ctx = jnp.concatenate(ctx_rows, axis=0)                   # (B*S, HIDDEN)

        # Attention output projection + residual + LayerNorm.
        attn_out = (jnp.dot(ctx, ao_w_ref[l],
                            preferred_element_type=jnp.float32) + ao_b_ref[l])
        x = _layernorm(attn_out + x, attn_ln_g_ref[l], attn_ln_b_ref[l])

        # Feed-forward block + residual + LayerNorm.
        h1 = _gelu(jnp.dot(x, ff_w1_ref[l],
                           preferred_element_type=jnp.float32) + ff_b1_ref[l])
        ff_out = (jnp.dot(h1, ff_w2_ref[l],
                          preferred_element_type=jnp.float32) + ff_b2_ref[l])
        x = _layernorm(ff_out + x, ffn_ln_g_ref[l], ffn_ln_b_ref[l])

    # ---- outputs ----
    hidden_ref[...] = x.astype(hidden_ref.dtype)                  # last_hidden_state

    # BERT pooler: dense(tanh) on the [CLS] token of each sequence.
    cls = jnp.concatenate([x[b * seq:b * seq + 1, :] for b in range(batch)],
                          axis=0)                                 # (B, HIDDEN)
    pool = jnp.tanh(jnp.dot(cls, pool_w_ref[...],
                            preferred_element_type=jnp.float32) + pool_b_ref[...])
    pool_ref[...] = pool.astype(pool_ref.dtype)


# ----------------------------------------------------------------------------
# Parameters (deterministic, synthetic) + packing into fused/stacked layout
# ----------------------------------------------------------------------------
def init_params(key):
    def dense(k, fan_in, fan_out):
        return jax.random.normal(k, (fan_in, fan_out), jnp.float32) * 0.02

    keys = iter(jax.random.split(key, 64))
    params = {
        "word_emb": jax.random.normal(next(keys), (VOCAB, HIDDEN), jnp.float32) * 0.02,
        "pos_emb": jax.random.normal(next(keys), (MAX_POS, HIDDEN), jnp.float32) * 0.02,
        "type_emb": jax.random.normal(next(keys), (2, HIDDEN), jnp.float32) * 0.02,
        "emb_ln_g": jnp.ones((HIDDEN,), jnp.float32),
        "emb_ln_b": jnp.zeros((HIDDEN,), jnp.float32),
        "pool_w": dense(next(keys), HIDDEN, HIDDEN),
        "pool_b": jnp.zeros((HIDDEN,), jnp.float32),
        "layers": [],
    }
    for _ in range(LAYERS):
        params["layers"].append({
            "q_w": dense(next(keys), HIDDEN, HIDDEN), "q_b": jnp.zeros((HIDDEN,), jnp.float32),
            "k_w": dense(next(keys), HIDDEN, HIDDEN), "k_b": jnp.zeros((HIDDEN,), jnp.float32),
            "v_w": dense(next(keys), HIDDEN, HIDDEN), "v_b": jnp.zeros((HIDDEN,), jnp.float32),
            "ao_w": dense(next(keys), HIDDEN, HIDDEN), "ao_b": jnp.zeros((HIDDEN,), jnp.float32),
            "attn_ln_g": jnp.ones((HIDDEN,), jnp.float32),
            "attn_ln_b": jnp.zeros((HIDDEN,), jnp.float32),
            "ff_w1": dense(next(keys), HIDDEN, FFN), "ff_b1": jnp.zeros((FFN,), jnp.float32),
            "ff_w2": dense(next(keys), FFN, HIDDEN), "ff_b2": jnp.zeros((HIDDEN,), jnp.float32),
            "ffn_ln_g": jnp.ones((HIDDEN,), jnp.float32),
            "ffn_ln_b": jnp.zeros((HIDDEN,), jnp.float32),
        })
    return params


def pack_params(params):
    """Fuse QKV (folding the attention scale into Q) and stack per-layer
    weights along a leading layer axis so the whole encoder is one kernel."""
    scale = jnp.float32(1.0 / math.sqrt(HEAD_DIM))
    stacks = {k: [] for k in ("qkv_w", "qkv_b", "ao_w", "ao_b",
                              "attn_ln_g", "attn_ln_b",
                              "ff_w1", "ff_b1", "ff_w2", "ff_b2",
                              "ffn_ln_g", "ffn_ln_b")}
    for layer in params["layers"]:
        stacks["qkv_w"].append(jnp.concatenate(
            [layer["q_w"] * scale, layer["k_w"], layer["v_w"]], axis=1))
        stacks["qkv_b"].append(jnp.concatenate(
            [layer["q_b"] * scale, layer["k_b"], layer["v_b"]],
            axis=0).reshape(1, 3 * HIDDEN))
        stacks["ao_w"].append(layer["ao_w"])
        stacks["ao_b"].append(layer["ao_b"].reshape(1, HIDDEN))
        stacks["attn_ln_g"].append(layer["attn_ln_g"].reshape(1, HIDDEN))
        stacks["attn_ln_b"].append(layer["attn_ln_b"].reshape(1, HIDDEN))
        stacks["ff_w1"].append(layer["ff_w1"])
        stacks["ff_b1"].append(layer["ff_b1"].reshape(1, FFN))
        stacks["ff_w2"].append(layer["ff_w2"])
        stacks["ff_b2"].append(layer["ff_b2"].reshape(1, HIDDEN))
        stacks["ffn_ln_g"].append(layer["ffn_ln_g"].reshape(1, HIDDEN))
        stacks["ffn_ln_b"].append(layer["ffn_ln_b"].reshape(1, HIDDEN))
    packed = {k: jnp.stack(v) for k, v in stacks.items()}
    packed.update({
        "word_emb": params["word_emb"],
        "pos_emb": params["pos_emb"],
        "type_emb": params["type_emb"],
        "emb_ln_g": params["emb_ln_g"].reshape(1, HIDDEN),
        "emb_ln_b": params["emb_ln_b"].reshape(1, HIDDEN),
        "pool_w": params["pool_w"],
        "pool_b": params["pool_b"].reshape(1, HIDDEN),
    })
    return packed


# ----------------------------------------------------------------------------
# Forward: embedding gather in JAX, everything else in ONE Pallas kernel
# ----------------------------------------------------------------------------
def encoder_forward(packed, input_ids, attention_mask):
    B, S = input_ids.shape

    # Embedding lookup (gather) stays in JAX; summed embeddings are the
    # kernel's activation input.
    emb = (packed["word_emb"][input_ids]
           + packed["pos_emb"][jnp.arange(S)][None, :, :]
           + packed["type_emb"][0][None, None, :]).reshape(B * S, HIDDEN)
    emb = emb.astype(jnp.float32)

    # Additive mask bias precomputed once per forward (broadcast over queries).
    mask_bias = ((1.0 - attention_mask.astype(jnp.float32))
                 .reshape(B, 1, S) * jnp.float32(-1e9))

    kernel = functools.partial(encoder_kernel, batch=B, seq=S)
    hidden, pool = pl.pallas_call(
        kernel,
        out_shape=(jax.ShapeDtypeStruct((B * S, HIDDEN), jnp.float32),
                   jax.ShapeDtypeStruct((B, HIDDEN), jnp.float32)),
    )(emb, mask_bias,
      packed["emb_ln_g"], packed["emb_ln_b"],
      packed["qkv_w"], packed["qkv_b"],
      packed["ao_w"], packed["ao_b"],
      packed["attn_ln_g"], packed["attn_ln_b"],
      packed["ff_w1"], packed["ff_b1"],
      packed["ff_w2"], packed["ff_b2"],
      packed["ffn_ln_g"], packed["ffn_ln_b"],
      packed["pool_w"], packed["pool_b"])

    hidden_states = hidden.reshape(B, S, HIDDEN)     # last_hidden_state
    pooler_output = pool                             # dense(tanh) on [CLS]
    return hidden_states, pooler_output


if __name__ == "__main__":
    B, S = 2, 8
    key = jax.random.PRNGKey(0)
    k_params, k_ids = jax.random.split(key)
    params = init_params(k_params)
    packed = pack_params(params)

    input_ids = jax.random.randint(k_ids, (B, S), 0, VOCAB, dtype=jnp.int32)
    # second sequence has 2 padding positions masked out
    attention_mask = jnp.array(
        [[1, 1, 1, 1, 1, 1, 1, 1],
         [1, 1, 1, 1, 1, 1, 0, 0]], dtype=jnp.int32)

    fwd = jax.jit(encoder_forward)
    hidden_states, cell_states = fwd(packed, input_ids, attention_mask)
    jax.block_until_ready((hidden_states, cell_states))

    assert hidden_states.shape == (B, S, HIDDEN)
    assert cell_states.shape == (B, HIDDEN)
    assert bool(jnp.all(jnp.isfinite(hidden_states)))
    assert bool(jnp.all(jnp.isfinite(cell_states)))
    print("KERNEL_OK")
</pallas_src>

<mosaic_0001>
module attributes {stable_mosaic.version = 11 : i64} {
  func.func @encoder_kernel(%arg0: memref<16x32xf32, #tpu.memory_space<vmem>>, %arg1: memref<2x1x8xf32, #tpu.memory_space<vmem>>, %arg2: memref<1x32xf32, #tpu.memory_space<vmem>>, %arg3: memref<1x32xf32, #tpu.memory_space<vmem>>, %arg4: memref<2x32x96xf32, #tpu.memory_space<vmem>>, %arg5: memref<2x1x96xf32, #tpu.memory_space<vmem>>, %arg6: memref<2x32x32xf32, #tpu.memory_space<vmem>>, %arg7: memref<2x1x32xf32, #tpu.memory_space<vmem>>, %arg8: memref<2x1x32xf32, #tpu.memory_space<vmem>>, %arg9: memref<2x1x32xf32, #tpu.memory_space<vmem>>, %arg10: memref<2x32x64xf32, #tpu.memory_space<vmem>>, %arg11: memref<2x1x64xf32, #tpu.memory_space<vmem>>, %arg12: memref<2x64x32xf32, #tpu.memory_space<vmem>>, %arg13: memref<2x1x32xf32, #tpu.memory_space<vmem>>, %arg14: memref<2x1x32xf32, #tpu.memory_space<vmem>>, %arg15: memref<2x1x32xf32, #tpu.memory_space<vmem>>, %arg16: memref<32x32xf32, #tpu.memory_space<vmem>>, %arg17: memref<1x32xf32, #tpu.memory_space<vmem>>, %arg18: memref<16x32xf32, #tpu.memory_space<vmem>>, %arg19: memref<2x32xf32, #tpu.memory_space<vmem>>) attributes {dimension_semantics = [], scalar_prefetch = 0 : i64, scratch_operands = 0 : i64, tpu.core_type = #tpu.core_type<tc>} {
    %c0 = arith.constant 0 : index
    %c0_0 = arith.constant 0 : index
    %0 = vector.load %arg0[%c0, %c0_0] : memref<16x32xf32, #tpu.memory_space<vmem>>, vector<16x32xf32>
    %c0_1 = arith.constant 0 : index
    %c0_2 = arith.constant 0 : index
    %1 = vector.load %arg2[%c0_1, %c0_2] : memref<1x32xf32, #tpu.memory_space<vmem>>, vector<1x32xf32>
    %c0_3 = arith.constant 0 : index
    %c0_4 = arith.constant 0 : index
    %2 = vector.load %arg3[%c0_3, %c0_4] : memref<1x32xf32, #tpu.memory_space<vmem>>, vector<1x32xf32>
    %cst = arith.constant dense<0.000000e+00> : vector<16xf32>
    %3 = vector.multi_reduction <add>, %0, %cst [1] : vector<16x32xf32> to vector<16xf32>
    %4 = vector.shape_cast %3 : vector<16xf32> to vector<16x1xf32>
    %cst_5 = arith.constant 3.200000e+01 : f32
    %5 = vector.broadcast %cst_5 : f32 to vector<16x1xf32>
    %6 = arith.divf %4, %5 : vector<16x1xf32>
    %7 = vector.broadcast %6 : vector<16x1xf32> to vector<16x32xf32>
    %8 = arith.subf %0, %7 : vector<16x32xf32>
    %9 = arith.mulf %8, %8 : vector<16x32xf32>
    %cst_6 = arith.constant dense<0.000000e+00> : vector<16xf32>
    %10 = vector.multi_reduction <add>, %9, %cst_6 [1] : vector<16x32xf32> to vector<16xf32>
    %11 = vector.shape_cast %10 : vector<16xf32> to vector<16x1xf32>
    %cst_7 = arith.constant 3.200000e+01 : f32
    %12 = vector.broadcast %cst_7 : f32 to vector<16x1xf32>
    %13 = arith.divf %11, %12 : vector<16x1xf32>
    %cst_8 = arith.constant 9.99999996E-13 : f32
    %14 = vector.broadcast %cst_8 : f32 to vector<16x1xf32>
    %15 = arith.addf %13, %14 : vector<16x1xf32>
    %16 = math.rsqrt %15 : vector<16x1xf32>
    %17 = vector.broadcast %6 : vector<16x1xf32> to vector<16x32xf32>
    %18 = arith.subf %0, %17 : vector<16x32xf32>
    %19 = vector.broadcast %16 : vector<16x1xf32> to vector<16x32xf32>
    %20 = arith.mulf %18, %19 : vector<16x32xf32>
    %21 = vector.broadcast %1 : vector<1x32xf32> to vector<16x32xf32>
    %22 = arith.mulf %20, %21 : vector<16x32xf32>
    %23 = vector.broadcast %2 : vector<1x32xf32> to vector<16x32xf32>
    %24 = arith.addf %22, %23 : vector<16x32xf32>
    %c0_9 = arith.constant 0 : index
    %c0_10 = arith.constant 0 : index
    %c0_11 = arith.constant 0 : index
    %25 = vector.load %arg4[%c0_9, %c0_10, %c0_11] : memref<2x32x96xf32, #tpu.memory_space<vmem>>, vector<1x32x96xf32>
    %26 = vector.shape_cast %25 : vector<1x32x96xf32> to vector<32x96xf32>
    %cst_12 = arith.constant dense<0.000000e+00> : vector<16x96xf32>
    %27 = tpu.matmul %24, %26, %cst_12 {dimension_numbers = #tpu.dot_dimension_numbers<[1], [0], [0], [1], [0, 0, 1, 1], [], []>} : vector<16x32xf32>, vector<32x96xf32>, vector<16x96xf32> -> vector<16x96xf32>
    %c0_13 = arith.constant 0 : index
    %c0_14 = arith.constant 0 : index
    %c0_15 = arith.constant 0 : index
    %28 = vector.load %arg5[%c0_13, %c0_14, %c0_15] : memref<2x1x96xf32, #tpu.memory_space<vmem>>, vector<1x1x96xf32>
    %29 = vector.shape_cast %28 : vector<1x1x96xf32> to vector<1x96xf32>
    %30 = vector.broadcast %29 : vector<1x96xf32> to vector<16x96xf32>
    %31 = arith.addf %27, %30 : vector<16x96xf32>
    %c0_16 = arith.constant 0 : index
    %c0_17 = arith.constant 0 : index
    %c0_18 = arith.constant 0 : index
    %32 = vector.load %arg1[%c0_16, %c0_17, %c0_18] : memref<2x1x8xf32, #tpu.memory_space<vmem>>, vector<1x1x8xf32>
    %33 = vector.shape_cast %32 : vector<1x1x8xf32> to vector<1x8xf32>
    %34 = vector.extract_strided_slice %31 {offsets = [0, 0], sizes = [8, 8], strides = [1, 1]} : vector<16x96xf32> to vector<8x8xf32>
    %35 = vector.extract_strided_slice %31 {offsets = [0, 32], sizes = [8, 8], strides = [1, 1]} : vector<16x96xf32> to vector<8x8xf32>
    %36 = vector.extract_strided_slice %31 {offsets = [0, 64], sizes = [8, 8], strides = [1, 1]} : vector<16x96xf32> to vector<8x8xf32>
    %cst_19 = arith.constant dense<0.000000e+00> : vector<8x8xf32>
    %37 = tpu.matmul %34, %35, %cst_19 {dimension_numbers = #tpu.dot_dimension_numbers<[1], [1], [0], [0], [0, 0, 1, 0], [], []>} : vector<8x8xf32>, vector<8x8xf32>, vector<8x8xf32> -> vector<8x8xf32>
    %38 = vector.broadcast %33 : vector<1x8xf32> to vector<8x8xf32>
    %39 = arith.addf %37, %38 : vector<8x8xf32>
    %cst_20 = arith.constant dense<0xFF800000> : vector<8xf32>
    %40 = vector.multi_reduction <maximumf>, %39, %cst_20 [1] : vector<8x8xf32> to vector<8xf32>
    %41 = vector.shape_cast %40 : vector<8xf32> to vector<8x1xf32>
    %42 = vector.broadcast %41 : vector<8x1xf32> to vector<8x8xf32>
    %43 = arith.subf %39, %42 : vector<8x8xf32>
    %44 = math.exp %43 : vector<8x8xf32>
    %cst_21 = arith.constant dense<0.000000e+00> : vector<8xf32>
    %45 = vector.multi_reduction <add>, %44, %cst_21 [1] : vector<8x8xf32> to vector<8xf32>
    %46 = vector.shape_cast %45 : vector<8xf32> to vector<8x1xf32>
    %47 = tpu.reciprocal %46 {approx = true} : vector<8x1xf32> -> vector<8x1xf32>
    %48 = vector.broadcast %47 : vector<8x1xf32> to vector<8x8xf32>
    %49 = arith.mulf %44, %48 : vector<8x8xf32>
    %cst_22 = arith.constant dense<0.000000e+00> : vector<8x8xf32>
    %50 = tpu.matmul %49, %36, %cst_22 {dimension_numbers = #tpu.dot_dimension_numbers<[1], [0], [0], [1], [0, 0, 1, 1], [], []>} : vector<8x8xf32>, vector<8x8xf32>, vector<8x8xf32> -> vector<8x8xf32>
    %51 = vector.extract_strided_slice %31 {offsets = [0, 8], sizes = [8, 8], strides = [1, 1]} : vector<16x96xf32> to vector<8x8xf32>
    %52 = vector.extract_strided_slice %31 {offsets = [0, 40], sizes = [8, 8], strides = [1, 1]} : vector<16x96xf32> to vector<8x8xf32>
    %53 = vector.extract_strided_slice %31 {offsets = [0, 72], sizes = [8, 8], strides = [1, 1]} : vector<16x96xf32> to vector<8x8xf32>
    %cst_23 = arith.constant dense<0.000000e+00> : vector<8x8xf32>
    %54 = tpu.matmul %51, %52, %cst_23 {dimension_numbers = #tpu.dot_dimension_numbers<[1], [1], [0], [0], [0, 0, 1, 0], [], []>} : vector<8x8xf32>, vector<8x8xf32>, vector<8x8xf32> -> vector<8x8xf32>
    %55 = vector.broadcast %33 : vector<1x8xf32> to vector<8x8xf32>
    %56 = arith.addf %54, %55 : vector<8x8xf32>
    %cst_24 = arith.constant dense<0xFF800000> : vector<8xf32>
    %57 = vector.multi_reduction <maximumf>, %56, %cst_24 [1] : vector<8x8xf32> to vector<8xf32>
    %58 = vector.shape_cast %57 : vector<8xf32> to vector<8x1xf32>
    %59 = vector.broadcast %58 : vector<8x1xf32> to vector<8x8xf32>
    %60 = arith.subf %56, %59 : vector<8x8xf32>
    %61 = math.exp %60 : vector<8x8xf32>
    %cst_25 = arith.constant dense<0.000000e+00> : vector<8xf32>
    %62 = vector.multi_reduction <add>, %61, %cst_25 [1] : vector<8x8xf32> to vector<8xf32>
    %63 = vector.shape_cast %62 : vector<8xf32> to vector<8x1xf32>
    %64 = tpu.reciprocal %63 {approx = true} : vector<8x1xf32> -> vector<8x1xf32>
    %65 = vector.broadcast %64 : vector<8x1xf32> to vector<8x8xf32>
    %66 = arith.mulf %61, %65 : vector<8x8xf32>
    %cst_26 = arith.constant dense<0.000000e+00> : vector<8x8xf32>
    %67 = tpu.matmul %66, %53, %cst_26 {dimension_numbers = #tpu.dot_dimension_numbers<[1], [0], [0], [1], [0, 0, 1, 1], [], []>} : vector<8x8xf32>, vector<8x8xf32>, vector<8x8xf32> -> vector<8x8xf32>
    %68 = vector.extract_strided_slice %31 {offsets = [0, 16], sizes = [8, 8], strides = [1, 1]} : vector<16x96xf32> to vector<8x8xf32>
    %69 = vector.extract_strided_slice %31 {offsets = [0, 48], sizes = [8, 8], strides = [1, 1]} : vector<16x96xf32> to vector<8x8xf32>
    %70 = vector.extract_strided_slice %31 {offsets = [0, 80], sizes = [8, 8], strides = [1, 1]} : vector<16x96xf32> to vector<8x8xf32>
    %cst_27 = arith.constant dense<0.000000e+00> : vector<8x8xf32>
    %71 = tpu.matmul %68, %69, %cst_27 {dimension_numbers = #tpu.dot_dimension_numbers<[1], [1], [0], [0], [0, 0, 1, 0], [], []>} : vector<8x8xf32>, vector<8x8xf32>, vector<8x8xf32> -> vector<8x8xf32>
    %72 = vector.broadcast %33 : vector<1x8xf32> to vector<8x8xf32>
    %73 = arith.addf %71, %72 : vector<8x8xf32>
    %cst_28 = arith.constant dense<0xFF800000> : vector<8xf32>
    %74 = vector.multi_reduction <maximumf>, %73, %cst_28 [1] : vector<8x8xf32> to vector<8xf32>
    %75 = vector.shape_cast %74 : vector<8xf32> to vector<8x1xf32>
    %76 = vector.broadcast %75 : vector<8x1xf32> to vector<8x8xf32>
    %77 = arith.subf %73, %76 : vector<8x8xf32>
    %78 = math.exp %77 : vector<8x8xf32>
    %cst_29 = arith.constant dense<0.000000e+00> : vector<8xf32>
    %79 = vector.multi_reduction <add>, %78, %cst_29 [1] : vector<8x8xf32> to vector<8xf32>
    %80 = vector.shape_cast %79 : vector<8xf32> to vector<8x1xf32>
    %81 = tpu.reciprocal %80 {approx = true} : vector<8x1xf32> -> vector<8x1xf32>
    %82 = vector.broadcast %81 : vector<8x1xf32> to vector<8x8xf32>
    %83 = arith.mulf %78, %82 : vector<8x8xf32>
    %cst_30 = arith.constant dense<0.000000e+00> : vector<8x8xf32>
    %84 = tpu.matmul %83, %70, %cst_30 {dimension_numbers = #tpu.dot_dimension_numbers<[1], [0], [0], [1], [0, 0, 1, 1], [], []>} : vector<8x8xf32>, vector<8x8xf32>, vector<8x8xf32> -> vector<8x8xf32>
    %85 = vector.extract_strided_slice %31 {offsets = [0, 24], sizes = [8, 8], strides = [1, 1]} : vector<16x96xf32> to vector<8x8xf32>
    %86 = vector.extract_strided_slice %31 {offsets = [0, 56], sizes = [8, 8], strides = [1, 1]} : vector<16x96xf32> to vector<8x8xf32>
    %87 = vector.extract_strided_slice %31 {offsets = [0, 88], sizes = [8, 8], strides = [1, 1]} : vector<16x96xf32> to vector<8x8xf32>
    %cst_31 = arith.constant dense<0.000000e+00> : vector<8x8xf32>
    %88 = tpu.matmul %85, %86, %cst_31 {dimension_numbers = #tpu.dot_dimension_numbers<[1], [1], [0], [0], [0, 0, 1, 0], [], []>} : vector<8x8xf32>, vector<8x8xf32>, vector<8x8xf32> -> vector<8x8xf32>
    %89 = vector.broadcast %33 : vector<1x8xf32> to vector<8x8xf32>
    %90 = arith.addf %88, %89 : vector<8x8xf32>
    %cst_32 = arith.constant dense<0xFF800000> : vector<8xf32>
    %91 = vector.multi_reduction <maximumf>, %90, %cst_32 [1] : vector<8x8xf32> to vector<8xf32>
    %92 = vector.shape_cast %91 : vector<8xf32> to vector<8x1xf32>
    %93 = vector.broadcast %92 : vector<8x1xf32> to vector<8x8xf32>
    %94 = arith.subf %90, %93 : vector<8x8xf32>
    %95 = math.exp %94 : vector<8x8xf32>
    %cst_33 = arith.constant dense<0.000000e+00> : vector<8xf32>
    %96 = vector.multi_reduction <add>, %95, %cst_33 [1] : vector<8x8xf32> to vector<8xf32>
    %97 = vector.shape_cast %96 : vector<8xf32> to vector<8x1xf32>
    %98 = tpu.reciprocal %97 {approx = true} : vector<8x1xf32> -> vector<8x1xf32>
    %99 = vector.broadcast %98 : vector<8x1xf32> to vector<8x8xf32>
    %100 = arith.mulf %95, %99 : vector<8x8xf32>
    %cst_34 = arith.constant dense<0.000000e+00> : vector<8x8xf32>
    %101 = tpu.matmul %100, %87, %cst_34 {dimension_numbers = #tpu.dot_dimension_numbers<[1], [0], [0], [1], [0, 0, 1, 1], [], []>} : vector<8x8xf32>, vector<8x8xf32>, vector<8x8xf32> -> vector<8x8xf32>
    %102 = tpu.concatenate %50, %67, %84, %101 in 1 : vector<8x8xf32>, vector<8x8xf32>, vector<8x8xf32>, vector<8x8xf32> -> vector<8x32xf32>
    %c1 = arith.constant 1 : index
    %c0_35 = arith.constant 0 : index
    %c0_36 = arith.constant 0 : index
    %103 = vector.load %arg1[%c1, %c0_35, %c0_36] : memref<2x1x8xf32, #tpu.memory_space<vmem>>, vector<1x1x8xf32>
    %104 = vector.shape_cast %103 : vector<1x1x8xf32> to vector<1x8xf32>
    %105 = vector.extract_strided_slice %31 {offsets = [8, 0], sizes = [8, 8], strides = [1, 1]} : vector<16x96xf32> to vector<8x8xf32>
    %106 = vector.extract_strided_slice %31 {offsets = [8, 32], sizes = [8, 8], strides = [1, 1]} : vector<16x96xf32> to vector<8x8xf32>
    %107 = vector.extract_strided_slice %31 {offsets = [8, 64], sizes = [8, 8], strides = [1, 1]} : vector<16x96xf32> to vector<8x8xf32>
    %cst_37 = arith.constant dense<0.000000e+00> : vector<8x8xf32>
    %108 = tpu.matmul %105, %106, %cst_37 {dimension_numbers = #tpu.dot_dimension_numbers<[1], [1], [0], [0], [0, 0, 1, 0], [], []>} : vector<8x8xf32>, vector<8x8xf32>, vector<8x8xf32> -> vector<8x8xf32>
    %109 = vector.broadcast %104 : vector<1x8xf32> to vector<8x8xf32>
    %110 = arith.addf %108, %109 : vector<8x8xf32>
    %cst_38 = arith.constant dense<0xFF800000> : vector<8xf32>
    %111 = vector.multi_reduction <maximumf>, %110, %cst_38 [1] : vector<8x8xf32> to vector<8xf32>
    %112 = vector.shape_cast %111 : vector<8xf32> to vector<8x1xf32>
    %113 = vector.broadcast %112 : vector<8x1xf32> to vector<8x8xf32>
    %114 = arith.subf %110, %113 : vector<8x8xf32>
    %115 = math.exp %114 : vector<8x8xf32>
    %cst_39 = arith.constant dense<0.000000e+00> : vector<8xf32>
    %116 = vector.multi_reduction <add>, %115, %cst_39 [1] : vector<8x8xf32> to vector<8xf32>
    %117 = vector.shape_cast %116 : vector<8xf32> to vector<8x1xf32>
    %118 = tpu.reciprocal %117 {approx = true} : vector<8x1xf32> -> vector<8x1xf32>
    %119 = vector.broadcast %118 : vector<8x1xf32> to vector<8x8xf32>
    %120 = arith.mulf %115, %119 : vector<8x8xf32>
    %cst_40 = arith.constant dense<0.000000e+00> : vector<8x8xf32>
    %121 = tpu.matmul %120, %107, %cst_40 {dimension_numbers = #tpu.dot_dimension_numbers<[1], [0], [0], [1], [0, 0, 1, 1], [], []>} : vector<8x8xf32>, vector<8x8xf32>, vector<8x8xf32> -> vector<8x8xf32>
    %122 = vector.extract_strided_slice %31 {offsets = [8, 8], sizes = [8, 8], strides = [1, 1]} : vector<16x96xf32> to vector<8x8xf32>
    %123 = vector.extract_strided_slice %31 {offsets = [8, 40], sizes = [8, 8], strides = [1, 1]} : vector<16x96xf32> to vector<8x8xf32>
    %124 = vector.extract_strided_slice %31 {offsets = [8, 72], sizes = [8, 8], strides = [1, 1]} : vector<16x96xf32> to vector<8x8xf32>
    %cst_41 = arith.constant dense<0.000000e+00> : vector<8x8xf32>
    %125 = tpu.matmul %122, %123, %cst_41 {dimension_numbers = #tpu.dot_dimension_numbers<[1], [1], [0], [0], [0, 0, 1, 0], [], []>} : vector<8x8xf32>, vector<8x8xf32>, vector<8x8xf32> -> vector<8x8xf32>
    %126 = vector.broadcast %104 : vector<1x8xf32> to vector<8x8xf32>
    %127 = arith.addf %125, %126 : vector<8x8xf32>
    %cst_42 = arith.constant dense<0xFF800000> : vector<8xf32>
    %128 = vector.multi_reduction <maximumf>, %127, %cst_42 [1] : vector<8x8xf32> to vector<8xf32>
    %129 = vector.shape_cast %128 : vector<8xf32> to vector<8x1xf32>
    %130 = vector.broadcast %129 : vector<8x1xf32> to vector<8x8xf32>
    %131 = arith.subf %127, %130 : vector<8x8xf32>
    %132 = math.exp %131 : vector<8x8xf32>
    %cst_43 = arith.constant dense<0.000000e+00> : vector<8xf32>
    %133 = vector.multi_reduction <add>, %132, %cst_43 [1] : vector<8x8xf32> to vector<8xf32>
    %134 = vector.shape_cast %133 : vector<8xf32> to vector<8x1xf32>
    %135 = tpu.reciprocal %134 {approx = true} : vector<8x1xf32> -> vector<8x1xf32>
    %136 = vector.broadcast %135 : vector<8x1xf32> to vector<8x8xf32>
    %137 = arith.mulf %132, %136 : vector<8x8xf32>
    %cst_44 = arith.constant dense<0.000000e+00> : vector<8x8xf32>
    %138 = tpu.matmul %137, %124, %cst_44 {dimension_numbers = #tpu.dot_dimension_numbers<[1], [0], [0], [1], [0, 0, 1, 1], [], []>} : vector<8x8xf32>, vector<8x8xf32>, vector<8x8xf32> -> vector<8x8xf32>
    %139 = vector.extract_strided_slice %31 {offsets = [8, 16], sizes = [8, 8], strides = [1, 1]} : vector<16x96xf32> to vector<8x8xf32>
    %140 = vector.extract_strided_slice %31 {offsets = [8, 48], sizes = [8, 8], strides = [1, 1]} : vector<16x96xf32> to vector<8x8xf32>
    %141 = vector.extract_strided_slice %31 {offsets = [8, 80], sizes = [8, 8], strides = [1, 1]} : vector<16x96xf32> to vector<8x8xf32>
    %cst_45 = arith.constant dense<0.000000e+00> : vector<8x8xf32>
    %142 = tpu.matmul %139, %140, %cst_45 {dimension_numbers = #tpu.dot_dimension_numbers<[1], [1], [0], [0], [0, 0, 1, 0], [], []>} : vector<8x8xf32>, vector<8x8xf32>, vector<8x8xf32> -> vector<8x8xf32>
    %143 = vector.broadcast %104 : vector<1x8xf32> to vector<8x8xf32>
    %144 = arith.addf %142, %143 : vector<8x8xf32>
    %cst_46 = arith.constant dense<0xFF800000> : vector<8xf32>
    %145 = vector.multi_reduction <maximumf>, %144, %cst_46 [1] : vector<8x8xf32> to vector<8xf32>
    %146 = vector.shape_cast %145 : vector<8xf32> to vector<8x1xf32>
    %147 = vector.broadcast %146 : vector<8x1xf32> to vector<8x8xf32>
    %148 = arith.subf %144, %147 : vector<8x8xf32>
    %149 = math.exp %148 : vector<8x8xf32>
    %cst_47 = arith.constant dense<0.000000e+00> : vector<8xf32>
    %150 = vector.multi_reduction <add>, %149, %cst_47 [1] : vector<8x8xf32> to vector<8xf32>
    %151 = vector.shape_cast %150 : vector<8xf32> to vector<8x1xf32>
    %152 = tpu.reciprocal %151 {approx = true} : vector<8x1xf32> -> vector<8x1xf32>
    %153 = vector.broadcast %152 : vector<8x1xf32> to vector<8x8xf32>
    %154 = arith.mulf %149, %153 : vector<8x8xf32>
    %cst_48 = arith.constant dense<0.000000e+00> : vector<8x8xf32>
    %155 = tpu.matmul %154, %141, %cst_48 {dimension_numbers = #tpu.dot_dimension_numbers<[1], [0], [0], [1], [0, 0, 1, 1], [], []>} : vector<8x8xf32>, vector<8x8xf32>, vector<8x8xf32> -> vector<8x8xf32>
    %156 = vector.extract_strided_slice %31 {offsets = [8, 24], sizes = [8, 8], strides = [1, 1]} : vector<16x96xf32> to vector<8x8xf32>
    %157 = vector.extract_strided_slice %31 {offsets = [8, 56], sizes = [8, 8], strides = [1, 1]} : vector<16x96xf32> to vector<8x8xf32>
    %158 = vector.extract_strided_slice %31 {offsets = [8, 88], sizes = [8, 8], strides = [1, 1]} : vector<16x96xf32> to vector<8x8xf32>
    %cst_49 = arith.constant dense<0.000000e+00> : vector<8x8xf32>
    %159 = tpu.matmul %156, %157, %cst_49 {dimension_numbers = #tpu.dot_dimension_numbers<[1], [1], [0], [0], [0, 0, 1, 0], [], []>} : vector<8x8xf32>, vector<8x8xf32>, vector<8x8xf32> -> vector<8x8xf32>
    %160 = vector.broadcast %104 : vector<1x8xf32> to vector<8x8xf32>
    %161 = arith.addf %159, %160 : vector<8x8xf32>
    %cst_50 = arith.constant dense<0xFF800000> : vector<8xf32>
    %162 = vector.multi_reduction <maximumf>, %161, %cst_50 [1] : vector<8x8xf32> to vector<8xf32>
    %163 = vector.shape_cast %162 : vector<8xf32> to vector<8x1xf32>
    %164 = vector.broadcast %163 : vector<8x1xf32> to vector<8x8xf32>
    %165 = arith.subf %161, %164 : vector<8x8xf32>
    %166 = math.exp %165 : vector<8x8xf32>
    %cst_51 = arith.constant dense<0.000000e+00> : vector<8xf32>
    %167 = vector.multi_reduction <add>, %166, %cst_51 [1] : vector<8x8xf32> to vector<8xf32>
    %168 = vector.shape_cast %167 : vector<8xf32> to vector<8x1xf32>
    %169 = tpu.reciprocal %168 {approx = true} : vector<8x1xf32> -> vector<8x1xf32>
    %170 = vector.broadcast %169 : vector<8x1xf32> to vector<8x8xf32>
    %171 = arith.mulf %166, %170 : vector<8x8xf32>
    %cst_52 = arith.constant dense<0.000000e+00> : vector<8x8xf32>
    %172 = tpu.matmul %171, %158, %cst_52 {dimension_numbers = #tpu.dot_dimension_numbers<[1], [0], [0], [1], [0, 0, 1, 1], [], []>} : vector<8x8xf32>, vector<8x8xf32>, vector<8x8xf32> -> vector<8x8xf32>
    %173 = tpu.concatenate %121, %138, %155, %172 in 1 : vector<8x8xf32>, vector<8x8xf32>, vector<8x8xf32>, vector<8x8xf32> -> vector<8x32xf32>
    %174 = tpu.concatenate %102, %173 in 0 : vector<8x32xf32>, vector<8x32xf32> -> vector<16x32xf32>
    %c0_53 = arith.constant 0 : index
    %c0_54 = arith.constant 0 : index
    %c0_55 = arith.constant 0 : index
    %175 = vector.load %arg6[%c0_53, %c0_54, %c0_55] : memref<2x32x32xf32, #tpu.memory_space<vmem>>, vector<1x32x32xf32>
    %176 = vector.shape_cast %175 : vector<1x32x32xf32> to vector<32x32xf32>
    %cst_56 = arith.constant dense<0.000000e+00> : vector<16x32xf32>
    %177 = tpu.matmul %174, %176, %cst_56 {dimension_numbers = #tpu.dot_dimension_numbers<[1], [0], [0], [1], [0, 0, 1, 1], [], []>} : vector<16x32xf32>, vector<32x32xf32>, vector<16x32xf32> -> vector<16x32xf32>
    %c0_57 = arith.constant 0 : index
    %c0_58 = arith.constant 0 : index
    %c0_59 = arith.constant 0 : index
    %178 = vector.load %arg7[%c0_57, %c0_58, %c0_59] : memref<2x1x32xf32, #tpu.memory_space<vmem>>, vector<1x1x32xf32>
    %179 = vector.shape_cast %178 : vector<1x1x32xf32> to vector<1x32xf32>
    %180 = vector.broadcast %179 : vector<1x32xf32> to vector<16x32xf32>
    %181 = arith.addf %177, %180 : vector<16x32xf32>
    %182 = arith.addf %181, %24 : vector<16x32xf32>
    %c0_60 = arith.constant 0 : index
    %c0_61 = arith.constant 0 : index
    %c0_62 = arith.constant 0 : index
    %183 = vector.load %arg8[%c0_60, %c0_61, %c0_62] : memref<2x1x32xf32, #tpu.memory_space<vmem>>, vector<1x1x32xf32>
    %184 = vector.shape_cast %183 : vector<1x1x32xf32> to vector<1x32xf32>
    %c0_63 = arith.constant 0 : index
    %c0_64 = arith.constant 0 : index
    %c0_65 = arith.constant 0 : index
    %185 = vector.load %arg9[%c0_63, %c0_64, %c0_65] : memref<2x1x32xf32, #tpu.memory_space<vmem>>, vector<1x1x32xf32>
    %186 = vector.shape_cast %185 : vector<1x1x32xf32> to vector<1x32xf32>
    %cst_66 = arith.constant dense<0.000000e+00> : vector<16xf32>
    %187 = vector.multi_reduction <add>, %182, %cst_66 [1] : vector<16x32xf32> to vector<16xf32>
    %188 = vector.shape_cast %187 : vector<16xf32> to vector<16x1xf32>
    %cst_67 = arith.constant 3.200000e+01 : f32
    %189 = vector.broadcast %cst_67 : f32 to vector<16x1xf32>
    %190 = arith.divf %188, %189 : vector<16x1xf32>
    %191 = vector.broadcast %190 : vector<16x1xf32> to vector<16x32xf32>
    %192 = arith.subf %182, %191 : vector<16x32xf32>
    %193 = arith.mulf %192, %192 : vector<16x32xf32>
    %cst_68 = arith.constant dense<0.000000e+00> : vector<16xf32>
    %194 = vector.multi_reduction <add>, %193, %cst_68 [1] : vector<16x32xf32> to vector<16xf32>
    %195 = vector.shape_cast %194 : vector<16xf32> to vector<16x1xf32>
    %cst_69 = arith.constant 3.200000e+01 : f32
    %196 = vector.broadcast %cst_69 : f32 to vector<16x1xf32>
    %197 = arith.divf %195, %196 : vector<16x1xf32>
    %cst_70 = arith.constant 9.99999996E-13 : f32
    %198 = vector.broadcast %cst_70 : f32 to vector<16x1xf32>
    %199 = arith.addf %197, %198 : vector<16x1xf32>
    %200 = math.rsqrt %199 : vector<16x1xf32>
    %201 = vector.broadcast %190 : vector<16x1xf32> to vector<16x32xf32>
    %202 = arith.subf %182, %201 : vector<16x32xf32>
    %203 = vector.broadcast %200 : vector<16x1xf32> to vector<16x32xf32>
    %204 = arith.mulf %202, %203 : vector<16x32xf32>
    %205 = vector.broadcast %184 : vector<1x32xf32> to vector<16x32xf32>
    %206 = arith.mulf %204, %205 : vector<16x32xf32>
    %207 = vector.broadcast %186 : vector<1x32xf32> to vector<16x32xf32>
    %208 = arith.addf %206, %207 : vector<16x32xf32>
    %c0_71 = arith.constant 0 : index
    %c0_72 = arith.constant 0 : index
    %c0_73 = arith.constant 0 : index
    %209 = vector.load %arg10[%c0_71, %c0_72, %c0_73] : memref<2x32x64xf32, #tpu.memory_space<vmem>>, vector<1x32x64xf32>
    %210 = vector.shape_cast %209 : vector<1x32x64xf32> to vector<32x64xf32>
    %cst_74 = arith.constant dense<0.000000e+00> : vector<16x64xf32>
    %211 = tpu.matmul %208, %210, %cst_74 {dimension_numbers = #tpu.dot_dimension_numbers<[1], [0], [0], [1], [0, 0, 1, 1], [], []>} : vector<16x32xf32>, vector<32x64xf32>, vector<16x64xf32> -> vector<16x64xf32>
    %c0_75 = arith.constant 0 : index
    %c0_76 = arith.constant 0 : index
    %c0_77 = arith.constant 0 : index
    %212 = vector.load %arg11[%c0_75, %c0_76, %c0_77] : memref<2x1x64xf32, #tpu.memory_space<vmem>>, vector<1x1x64xf32>
    %213 = vector.shape_cast %212 : vector<1x1x64xf32> to vector<1x64xf32>
    %214 = vector.broadcast %213 : vector<1x64xf32> to vector<16x64xf32>
    %215 = arith.addf %211, %214 : vector<16x64xf32>
    %cst_78 = arith.constant 5.000000e-01 : f32
    %216 = vector.broadcast %cst_78 : f32 to vector<16x64xf32>
    %217 = arith.mulf %216, %215 : vector<16x64xf32>
    %cst_79 = arith.constant 4.471500e-02 : f32
    %218 = vector.broadcast %cst_79 : f32 to vector<16x64xf32>
    %219 = arith.mulf %218, %215 : vector<16x64xf32>
    %220 = arith.mulf %219, %215 : vector<16x64xf32>
    %221 = arith.mulf %220, %215 : vector<16x64xf32>
    %222 = arith.addf %215, %221 : vector<16x64xf32>
    %cst_80 = arith.constant 0.797884583 : f32
    %223 = vector.broadcast %cst_80 : f32 to vector<16x64xf32>
    %224 = arith.mulf %223, %222 : vector<16x64xf32>
    %225 = math.tanh %224 : vector<16x64xf32>
    %cst_81 = arith.constant 1.000000e+00 : f32
    %226 = vector.broadcast %cst_81 : f32 to vector<16x64xf32>
    %227 = arith.addf %226, %225 : vector<16x64xf32>
    %228 = arith.mulf %217, %227 : vector<16x64xf32>
    %c0_82 = arith.constant 0 : index
    %c0_83 = arith.constant 0 : index
    %c0_84 = arith.constant 0 : index
    %229 = vector.load %arg12[%c0_82, %c0_83, %c0_84] : memref<2x64x32xf32, #tpu.memory_space<vmem>>, vector<1x64x32xf32>
    %230 = vector.shape_cast %229 : vector<1x64x32xf32> to vector<64x32xf32>
    %cst_85 = arith.constant dense<0.000000e+00> : vector<16x32xf32>
    %231 = tpu.matmul %228, %230, %cst_85 {dimension_numbers = #tpu.dot_dimension_numbers<[1], [0], [0], [1], [0, 0, 1, 1], [], []>} : vector<16x64xf32>, vector<64x32xf32>, vector<16x32xf32> -> vector<16x32xf32>
    %c0_86 = arith.constant 0 : index
    %c0_87 = arith.constant 0 : index
    %c0_88 = arith.constant 0 : index
    %232 = vector.load %arg13[%c0_86, %c0_87, %c0_88] : memref<2x1x32xf32, #tpu.memory_space<vmem>>, vector<1x1x32xf32>
    %233 = vector.shape_cast %232 : vector<1x1x32xf32> to vector<1x32xf32>
    %234 = vector.broadcast %233 : vector<1x32xf32> to vector<16x32xf32>
    %235 = arith.addf %231, %234 : vector<16x32xf32>
    %236 = arith.addf %235, %208 : vector<16x32xf32>
    %c0_89 = arith.constant 0 : index
    %c0_90 = arith.constant 0 : index
    %c0_91 = arith.constant 0 : index
    %237 = vector.load %arg14[%c0_89, %c0_90, %c0_91] : memref<2x1x32xf32, #tpu.memory_space<vmem>>, vector<1x1x32xf32>
    %238 = vector.shape_cast %237 : vector<1x1x32xf32> to vector<1x32xf32>
    %c0_92 = arith.constant 0 : index
    %c0_93 = arith.constant 0 : index
    %c0_94 = arith.constant 0 : index
    %239 = vector.load %arg15[%c0_92, %c0_93, %c0_94] : memref<2x1x32xf32, #tpu.memory_space<vmem>>, vector<1x1x32xf32>
    %240 = vector.shape_cast %239 : vector<1x1x32xf32> to vector<1x32xf32>
    %cst_95 = arith.constant dense<0.000000e+00> : vector<16xf32>
    %241 = vector.multi_reduction <add>, %236, %cst_95 [1] : vector<16x32xf32> to vector<16xf32>
    %242 = vector.shape_cast %241 : vector<16xf32> to vector<16x1xf32>
    %cst_96 = arith.constant 3.200000e+01 : f32
    %243 = vector.broadcast %cst_96 : f32 to vector<16x1xf32>
    %244 = arith.divf %242, %243 : vector<16x1xf32>
    %245 = vector.broadcast %244 : vector<16x1xf32> to vector<16x32xf32>
    %246 = arith.subf %236, %245 : vector<16x32xf32>
    %247 = arith.mulf %246, %246 : vector<16x32xf32>
    %cst_97 = arith.constant dense<0.000000e+00> : vector<16xf32>
    %248 = vector.multi_reduction <add>, %247, %cst_97 [1] : vector<16x32xf32> to vector<16xf32>
    %249 = vector.shape_cast %248 : vector<16xf32> to vector<16x1xf32>
    %cst_98 = arith.constant 3.200000e+01 : f32
    %250 = vector.broadcast %cst_98 : f32 to vector<16x1xf32>
    %251 = arith.divf %249, %250 : vector<16x1xf32>
    %cst_99 = arith.constant 9.99999996E-13 : f32
    %252 = vector.broadcast %cst_99 : f32 to vector<16x1xf32>
    %253 = arith.addf %251, %252 : vector<16x1xf32>
    %254 = math.rsqrt %253 : vector<16x1xf32>
    %255 = vector.broadcast %244 : vector<16x1xf32> to vector<16x32xf32>
    %256 = arith.subf %236, %255 : vector<16x32xf32>
    %257 = vector.broadcast %254 : vector<16x1xf32> to vector<16x32xf32>
    %258 = arith.mulf %256, %257 : vector<16x32xf32>
    %259 = vector.broadcast %238 : vector<1x32xf32> to vector<16x32xf32>
    %260 = arith.mulf %258, %259 : vector<16x32xf32>
    %261 = vector.broadcast %240 : vector<1x32xf32> to vector<16x32xf32>
    %262 = arith.addf %260, %261 : vector<16x32xf32>
    %c1_100 = arith.constant 1 : index
    %c0_101 = arith.constant 0 : index
    %c0_102 = arith.constant 0 : index
    %263 = vector.load %arg4[%c1_100, %c0_101, %c0_102] : memref<2x32x96xf32, #tpu.memory_space<vmem>>, vector<1x32x96xf32>
    %264 = vector.shape_cast %263 : vector<1x32x96xf32> to vector<32x96xf32>
    %cst_103 = arith.constant dense<0.000000e+00> : vector<16x96xf32>
    %265 = tpu.matmul %262, %264, %cst_103 {dimension_numbers = #tpu.dot_dimension_numbers<[1], [0], [0], [1], [0, 0, 1, 1], [], []>} : vector<16x32xf32>, vector<32x96xf32>, vector<16x96xf32> -> vector<16x96xf32>
    %c1_104 = arith.constant 1 : index
    %c0_105 = arith.constant 0 : index
    %c0_106 = arith.constant 0 : index
    %266 = vector.load %arg5[%c1_104, %c0_105, %c0_106] : memref<2x1x96xf32, #tpu.memory_space<vmem>>, vector<1x1x96xf32>
    %267 = vector.shape_cast %266 : vector<1x1x96xf32> to vector<1x96xf32>
    %268 = vector.broadcast %267 : vector<1x96xf32> to vector<16x96xf32>
    %269 = arith.addf %265, %268 : vector<16x96xf32>
    %c0_107 = arith.constant 0 : index
    %c0_108 = arith.constant 0 : index
    %c0_109 = arith.constant 0 : index
    %270 = vector.load %arg1[%c0_107, %c0_108, %c0_109] : memref<2x1x8xf32, #tpu.memory_space<vmem>>, vector<1x1x8xf32>
    %271 = vector.shape_cast %270 : vector<1x1x8xf32> to vector<1x8xf32>
    %272 = vector.extract_strided_slice %269 {offsets = [0, 0], sizes = [8, 8], strides = [1, 1]} : vector<16x96xf32> to vector<8x8xf32>
    %273 = vector.extract_strided_slice %269 {offsets = [0, 32], sizes = [8, 8], strides = [1, 1]} : vector<16x96xf32> to vector<8x8xf32>
    %274 = vector.extract_strided_slice %269 {offsets = [0, 64], sizes = [8, 8], strides = [1, 1]} : vector<16x96xf32> to vector<8x8xf32>
    %cst_110 = arith.constant dense<0.000000e+00> : vector<8x8xf32>
    %275 = tpu.matmul %272, %273, %cst_110 {dimension_numbers = #tpu.dot_dimension_numbers<[1], [1], [0], [0], [0, 0, 1, 0], [], []>} : vector<8x8xf32>, vector<8x8xf32>, vector<8x8xf32> -> vector<8x8xf32>
    %276 = vector.broadcast %271 : vector<1x8xf32> to vector<8x8xf32>
    %277 = arith.addf %275, %276 : vector<8x8xf32>
    %cst_111 = arith.constant dense<0xFF800000> : vector<8xf32>
    %278 = vector.multi_reduction <maximumf>, %277, %cst_111 [1] : vector<8x8xf32> to vector<8xf32>
    %279 = vector.shape_cast %278 : vector<8xf32> to vector<8x1xf32>
    %280 = vector.broadcast %279 : vector<8x1xf32> to vector<8x8xf32>
    %281 = arith.subf %277, %280 : vector<8x8xf32>
    %282 = math.exp %281 : vector<8x8xf32>
    %cst_112 = arith.constant dense<0.000000e+00> : vector<8xf32>
    %283 = vector.multi_reduction <add>, %282, %cst_112 [1] : vector<8x8xf32> to vector<8xf32>
    %284 = vector.shape_cast %283 : vector<8xf32> to vector<8x1xf32>
    %285 = tpu.reciprocal %284 {approx = true} : vector<8x1xf32> -> vector<8x1xf32>
    %286 = vector.broadcast %285 : vector<8x1xf32> to vector<8x8xf32>
    %287 = arith.mulf %282, %286 : vector<8x8xf32>
    %cst_113 = arith.constant dense<0.000000e+00> : vector<8x8xf32>
    %288 = tpu.matmul %287, %274, %cst_113 {dimension_numbers = #tpu.dot_dimension_numbers<[1], [0], [0], [1], [0, 0, 1, 1], [], []>} : vector<8x8xf32>, vector<8x8xf32>, vector<8x8xf32> -> vector<8x8xf32>
    %289 = vector.extract_strided_slice %269 {offsets = [0, 8], sizes = [8, 8], strides = [1, 1]} : vector<16x96xf32> to vector<8x8xf32>
    %290 = vector.extract_strided_slice %269 {offsets = [0, 40], sizes = [8, 8], strides = [1, 1]} : vector<16x96xf32> to vector<8x8xf32>
    %291 = vector.extract_strided_slice %269 {offsets = [0, 72], sizes = [8, 8], strides = [1, 1]} : vector<16x96xf32> to vector<8x8xf32>
    %cst_114 = arith.constant dense<0.000000e+00> : vector<8x8xf32>
    %292 = tpu.matmul %289, %290, %cst_114 {dimension_numbers = #tpu.dot_dimension_numbers<[1], [1], [0], [0], [0, 0, 1, 0], [], []>} : vector<8x8xf32>, vector<8x8xf32>, vector<8x8xf32> -> vector<8x8xf32>
    %293 = vector.broadcast %271 : vector<1x8xf32> to vector<8x8xf32>
    %294 = arith.addf %292, %293 : vector<8x8xf32>
    %cst_115 = arith.constant dense<0xFF800000> : vector<8xf32>
    %295 = vector.multi_reduction <maximumf>, %294, %cst_115 [1] : vector<8x8xf32> to vector<8xf32>
    %296 = vector.shape_cast %295 : vector<8xf32> to vector<8x1xf32>
    %297 = vector.broadcast %296 : vector<8x1xf32> to vector<8x8xf32>
    %298 = arith.subf %294, %297 : vector<8x8xf32>
    %299 = math.exp %298 : vector<8x8xf32>
    %cst_116 = arith.constant dense<0.000000e+00> : vector<8xf32>
    %300 = vector.multi_reduction <add>, %299, %cst_116 [1] : vector<8x8xf32> to vector<8xf32>
    %301 = vector.shape_cast %300 : vector<8xf32> to vector<8x1xf32>
    %302 = tpu.reciprocal %301 {approx = true} : vector<8x1xf32> -> vector<8x1xf32>
    %303 = vector.broadcast %302 : vector<8x1xf32> to vector<8x8xf32>
    %304 = arith.mulf %299, %303 : vector<8x8xf32>
    %cst_117 = arith.constant dense<0.000000e+00> : vector<8x8xf32>
    %305 = tpu.matmul %304, %291, %cst_117 {dimension_numbers = #tpu.dot_dimension_numbers<[1], [0], [0], [1], [0, 0, 1, 1], [], []>} : vector<8x8xf32>, vector<8x8xf32>, vector<8x8xf32> -> vector<8x8xf32>
    %306 = vector.extract_strided_slice %269 {offsets = [0, 16], sizes = [8, 8], strides = [1, 1]} : vector<16x96xf32> to vector<8x8xf32>
    %307 = vector.extract_strided_slice %269 {offsets = [0, 48], sizes = [8, 8], strides = [1, 1]} : vector<16x96xf32> to vector<8x8xf32>
    %308 = vector.extract_strided_slice %269 {offsets = [0, 80], sizes = [8, 8], strides = [1, 1]} : vector<16x96xf32> to vector<8x8xf32>
    %cst_118 = arith.constant dense<0.000000e+00> : vector<8x8xf32>
    %309 = tpu.matmul %306, %307, %cst_118 {dimension_numbers = #tpu.dot_dimension_numbers<[1], [1], [0], [0], [0, 0, 1, 0], [], []>} : vector<8x8xf32>, vector<8x8xf32>, vector<8x8xf32> -> vector<8x8xf32>
    %310 = vector.broadcast %271 : vector<1x8xf32> to vector<8x8xf32>
    %311 = arith.addf %309, %310 : vector<8x8xf32>
    %cst_119 = arith.constant dense<0xFF800000> : vector<8xf32>
    %312 = vector.multi_reduction <maximumf>, %311, %cst_119 [1] : vector<8x8xf32> to vector<8xf32>
    %313 = vector.shape_cast %312 : vector<8xf32> to vector<8x1xf32>
    %314 = vector.broadcast %313 : vector<8x1xf32> to vector<8x8xf32>
    %315 = arith.subf %311, %314 : vector<8x8xf32>
    %316 = math.exp %315 : vector<8x8xf32>
    %cst_120 = arith.constant dense<0.000000e+00> : vector<8xf32>
    %317 = vector.multi_reduction <add>, %316, %cst_120 [1] : vector<8x8xf32> to vector<8xf32>
    %318 = vector.shape_cast %317 : vector<8xf32> to vector<8x1xf32>
    %319 = tpu.reciprocal %318 {approx = true} : vector<8x1xf32> -> vector<8x1xf32>
    %320 = vector.broadcast %319 : vector<8x1xf32> to vector<8x8xf32>
    %321 = arith.mulf %316, %320 : vector<8x8xf32>
    %cst_121 = arith.constant dense<0.000000e+00> : vector<8x8xf32>
    %322 = tpu.matmul %321, %308, %cst_121 {dimension_numbers = #tpu.dot_dimension_numbers<[1], [0], [0], [1], [0, 0, 1, 1], [], []>} : vector<8x8xf32>, vector<8x8xf32>, vector<8x8xf32> -> vector<8x8xf32>
    %323 = vector.extract_strided_slice %269 {offsets = [0, 24], sizes = [8, 8], strides = [1, 1]} : vector<16x96xf32> to vector<8x8xf32>
    %324 = vector.extract_strided_slice %269 {offsets = [0, 56], sizes = [8, 8], strides = [1, 1]} : vector<16x96xf32> to vector<8x8xf32>
    %325 = vector.extract_strided_slice %269 {offsets = [0, 88], sizes = [8, 8], strides = [1, 1]} : vector<16x96xf32> to vector<8x8xf32>
    %cst_122 = arith.constant dense<0.000000e+00> : vector<8x8xf32>
    %326 = tpu.matmul %323, %324, %cst_122 {dimension_numbers = #tpu.dot_dimension_numbers<[1], [1], [0], [0], [0, 0, 1, 0], [], []>} : vector<8x8xf32>, vector<8x8xf32>, vector<8x8xf32> -> vector<8x8xf32>
    %327 = vector.broadcast %271 : vector<1x8xf32> to vector<8x8xf32>
    %328 = arith.addf %326, %327 : vector<8x8xf32>
    %cst_123 = arith.constant dense<0xFF800000> : vector<8xf32>
    %329 = vector.multi_reduction <maximumf>, %328, %cst_123 [1] : vector<8x8xf32> to vector<8xf32>
    %330 = vector.shape_cast %329 : vector<8xf32> to vector<8x1xf32>
    %331 = vector.broadcast %330 : vector<8x1xf32> to vector<8x8xf32>
    %332 = arith.subf %328, %331 : vector<8x8xf32>
    %333 = math.exp %332 : vector<8x8xf32>
    %cst_124 = arith.constant dense<0.000000e+00> : vector<8xf32>
    %334 = vector.multi_reduction <add>, %333, %cst_124 [1] : vector<8x8xf32> to vector<8xf32>
    %335 = vector.shape_cast %334 : vector<8xf32> to vector<8x1xf32>
    %336 = tpu.reciprocal %335 {approx = true} : vector<8x1xf32> -> vector<8x1xf32>
    %337 = vector.broadcast %336 : vector<8x1xf32> to vector<8x8xf32>
    %338 = arith.mulf %333, %337 : vector<8x8xf32>
    %cst_125 = arith.constant dense<0.000000e+00> : vector<8x8xf32>
    %339 = tpu.matmul %338, %325, %cst_125 {dimension_numbers = #tpu.dot_dimension_numbers<[1], [0], [0], [1], [0, 0, 1, 1], [], []>} : vector<8x8xf32>, vector<8x8xf32>, vector<8x8xf32> -> vector<8x8xf32>
    %340 = tpu.concatenate %288, %305, %322, %339 in 1 : vector<8x8xf32>, vector<8x8xf32>, vector<8x8xf32>, vector<8x8xf32> -> vector<8x32xf32>
    %c1_126 = arith.constant 1 : index
    %c0_127 = arith.constant 0 : index
    %c0_128 = arith.constant 0 : index
    %341 = vector.load %arg1[%c1_126, %c0_127, %c0_128] : memref<2x1x8xf32, #tpu.memory_space<vmem>>, vector<1x1x8xf32>
    %342 = vector.shape_cast %341 : vector<1x1x8xf32> to vector<1x8xf32>
    %343 = vector.extract_strided_slice %269 {offsets = [8, 0], sizes = [8, 8], strides = [1, 1]} : vector<16x96xf32> to vector<8x8xf32>
    %344 = vector.extract_strided_slice %269 {offsets = [8, 32], sizes = [8, 8], strides = [1, 1]} : vector<16x96xf32> to vector<8x8xf32>
    %345 = vector.extract_strided_slice %269 {offsets = [8, 64], sizes = [8, 8], strides = [1, 1]} : vector<16x96xf32> to vector<8x8xf32>
    %cst_129 = arith.constant dense<0.000000e+00> : vector<8x8xf32>
    %346 = tpu.matmul %343, %344, %cst_129 {dimension_numbers = #tpu.dot_dimension_numbers<[1], [1], [0], [0], [0, 0, 1, 0], [], []>} : vector<8x8xf32>, vector<8x8xf32>, vector<8x8xf32> -> vector<8x8xf32>
    %347 = vector.broadcast %342 : vector<1x8xf32> to vector<8x8xf32>
    %348 = arith.addf %346, %347 : vector<8x8xf32>
    %cst_130 = arith.constant dense<0xFF800000> : vector<8xf32>
    %349 = vector.multi_reduction <maximumf>, %348, %cst_130 [1] : vector<8x8xf32> to vector<8xf32>
    %350 = vector.shape_cast %349 : vector<8xf32> to vector<8x1xf32>
    %351 = vector.broadcast %350 : vector<8x1xf32> to vector<8x8xf32>
    %352 = arith.subf %348, %351 : vector<8x8xf32>
    %353 = math.exp %352 : vector<8x8xf32>
    %cst_131 = arith.constant dense<0.000000e+00> : vector<8xf32>
    %354 = vector.multi_reduction <add>, %353, %cst_131 [1] : vector<8x8xf32> to vector<8xf32>
    %355 = vector.shape_cast %354 : vector<8xf32> to vector<8x1xf32>
    %356 = tpu.reciprocal %355 {approx = true} : vector<8x1xf32> -> vector<8x1xf32>
    %357 = vector.broadcast %356 : vector<8x1xf32> to vector<8x8xf32>
    %358 = arith.mulf %353, %357 : vector<8x8xf32>
    %cst_132 = arith.constant dense<0.000000e+00> : vector<8x8xf32>
    %359 = tpu.matmul %358, %345, %cst_132 {dimension_numbers = #tpu.dot_dimension_numbers<[1], [0], [0], [1], [0, 0, 1, 1], [], []>} : vector<8x8xf32>, vector<8x8xf32>, vector<8x8xf32> -> vector<8x8xf32>
    %360 = vector.extract_strided_slice %269 {offsets = [8, 8], sizes = [8, 8], strides = [1, 1]} : vector<16x96xf32> to vector<8x8xf32>
    %361 = vector.extract_strided_slice %269 {offsets = [8, 40], sizes = [8, 8], strides = [1, 1]} : vector<16x96xf32> to vector<8x8xf32>
    %362 = vector.extract_strided_slice %269 {offsets = [8, 72], sizes = [8, 8], strides = [1, 1]} : vector<16x96xf32> to vector<8x8xf32>
    %cst_133 = arith.constant dense<0.000000e+00> : vector<8x8xf32>
    %363 = tpu.matmul %360, %361, %cst_133 {dimension_numbers = #tpu.dot_dimension_numbers<[1], [1], [0], [0], [0, 0, 1, 0], [], []>} : vector<8x8xf32>, vector<8x8xf32>, vector<8x8xf32> -> vector<8x8xf32>
    %364 = vector.broadcast %342 : vector<1x8xf32> to vector<8x8xf32>
    %365 = arith.addf %363, %364 : vector<8x8xf32>
    %cst_134 = arith.constant dense<0xFF800000> : vector<8xf32>
    %366 = vector.multi_reduction <maximumf>, %365, %cst_134 [1] : vector<8x8xf32> to vector<8xf32>
    %367 = vector.shape_cast %366 : vector<8xf32> to vector<8x1xf32>
    %368 = vector.broadcast %367 : vector<8x1xf32> to vector<8x8xf32>
    %369 = arith.subf %365, %368 : vector<8x8xf32>
    %370 = math.exp %369 : vector<8x8xf32>
    %cst_135 = arith.constant dense<0.000000e+00> : vector<8xf32>
    %371 = vector.multi_reduction <add>, %370, %cst_135 [1] : vector<8x8xf32> to vector<8xf32>
    %372 = vector.shape_cast %371 : vector<8xf32> to vector<8x1xf32>
    %373 = tpu.reciprocal %372 {approx = true} : vector<8x1xf32> -> vector<8x1xf32>
    %374 = vector.broadcast %373 : vector<8x1xf32> to vector<8x8xf32>
    %375 = arith.mulf %370, %374 : vector<8x8xf32>
    %cst_136 = arith.constant dense<0.000000e+00> : vector<8x8xf32>
    %376 = tpu.matmul %375, %362, %cst_136 {dimension_numbers = #tpu.dot_dimension_numbers<[1], [0], [0], [1], [0, 0, 1, 1], [], []>} : vector<8x8xf32>, vector<8x8xf32>, vector<8x8xf32> -> vector<8x8xf32>
    %377 = vector.extract_strided_slice %269 {offsets = [8, 16], sizes = [8, 8], strides = [1, 1]} : vector<16x96xf32> to vector<8x8xf32>
    %378 = vector.extract_strided_slice %269 {offsets = [8, 48], sizes = [8, 8], strides = [1, 1]} : vector<16x96xf32> to vector<8x8xf32>
    %379 = vector.extract_strided_slice %269 {offsets = [8, 80], sizes = [8, 8], strides = [1, 1]} : vector<16x96xf32> to vector<8x8xf32>
    %cst_137 = arith.constant dense<0.000000e+00> : vector<8x8xf32>
    %380 = tpu.matmul %377, %378, %cst_137 {dimension_numbers = #tpu.dot_dimension_numbers<[1], [1], [0], [0], [0, 0, 1, 0], [], []>} : vector<8x8xf32>, vector<8x8xf32>, vector<8x8xf32> -> vector<8x8xf32>
    %381 = vector.broadcast %342 : vector<1x8xf32> to vector<8x8xf32>
    %382 = arith.addf %380, %381 : vector<8x8xf32>
    %cst_138 = arith.constant dense<0xFF800000> : vector<8xf32>
    %383 = vector.multi_reduction <maximumf>, %382, %cst_138 [1] : vector<8x8xf32> to vector<8xf32>
    %384 = vector.shape_cast %383 : vector<8xf32> to vector<8x1xf32>
    %385 = vector.broadcast %384 : vector<8x1xf32> to vector<8x8xf32>
    %386 = arith.subf %382, %385 : vector<8x8xf32>
    %387 = math.exp %386 : vector<8x8xf32>
    %cst_139 = arith.constant dense<0.000000e+00> : vector<8xf32>
    %388 = vector.multi_reduction <add>, %387, %cst_139 [1] : vector<8x8xf32> to vector<8xf32>
    %389 = vector.shape_cast %388 : vector<8xf32> to vector<8x1xf32>
    %390 = tpu.reciprocal %389 {approx = true} : vector<8x1xf32> -> vector<8x1xf32>
    %391 = vector.broadcast %390 : vector<8x1xf32> to vector<8x8xf32>
    %392 = arith.mulf %387, %391 : vector<8x8xf32>
    %cst_140 = arith.constant dense<0.000000e+00> : vector<8x8xf32>
    %393 = tpu.matmul %392, %379, %cst_140 {dimension_numbers = #tpu.dot_dimension_numbers<[1], [0], [0], [1], [0, 0, 1, 1], [], []>} : vector<8x8xf32>, vector<8x8xf32>, vector<8x8xf32> -> vector<8x8xf32>
    %394 = vector.extract_strided_slice %269 {offsets = [8, 24], sizes = [8, 8], strides = [1, 1]} : vector<16x96xf32> to vector<8x8xf32>
    %395 = vector.extract_strided_slice %269 {offsets = [8, 56], sizes = [8, 8], strides = [1, 1]} : vector<16x96xf32> to vector<8x8xf32>
    %396 = vector.extract_strided_slice %269 {offsets = [8, 88], sizes = [8, 8], strides = [1, 1]} : vector<16x96xf32> to vector<8x8xf32>
    %cst_141 = arith.constant dense<0.000000e+00> : vector<8x8xf32>
    %397 = tpu.matmul %394, %395, %cst_141 {dimension_numbers = #tpu.dot_dimension_numbers<[1], [1], [0], [0], [0, 0, 1, 0], [], []>} : vector<8x8xf32>, vector<8x8xf32>, vector<8x8xf32> -> vector<8x8xf32>
    %398 = vector.broadcast %342 : vector<1x8xf32> to vector<8x8xf32>
    %399 = arith.addf %397, %398 : vector<8x8xf32>
    %cst_142 = arith.constant dense<0xFF800000> : vector<8xf32>
    %400 = vector.multi_reduction <maximumf>, %399, %cst_142 [1] : vector<8x8xf32> to vector<8xf32>
    %401 = vector.shape_cast %400 : vector<8xf32> to vector<8x1xf32>
    %402 = vector.broadcast %401 : vector<8x1xf32> to vector<8x8xf32>
    %403 = arith.subf %399, %402 : vector<8x8xf32>
    %404 = math.exp %403 : vector<8x8xf32>
    %cst_143 = arith.constant dense<0.000000e+00> : vector<8xf32>
    %405 = vector.multi_reduction <add>, %404, %cst_143 [1] : vector<8x8xf32> to vector<8xf32>
    %406 = vector.shape_cast %405 : vector<8xf32> to vector<8x1xf32>
    %407 = tpu.reciprocal %406 {approx = true} : vector<8x1xf32> -> vector<8x1xf32>
    %408 = vector.broadcast %407 : vector<8x1xf32> to vector<8x8xf32>
    %409 = arith.mulf %404, %408 : vector<8x8xf32>
    %cst_144 = arith.constant dense<0.000000e+00> : vector<8x8xf32>
    %410 = tpu.matmul %409, %396, %cst_144 {dimension_numbers = #tpu.dot_dimension_numbers<[1], [0], [0], [1], [0, 0, 1, 1], [], []>} : vector<8x8xf32>, vector<8x8xf32>, vector<8x8xf32> -> vector<8x8xf32>
    %411 = tpu.concatenate %359, %376, %393, %410 in 1 : vector<8x8xf32>, vector<8x8xf32>, vector<8x8xf32>, vector<8x8xf32> -> vector<8x32xf32>
    %412 = tpu.concatenate %340, %411 in 0 : vector<8x32xf32>, vector<8x32xf32> -> vector<16x32xf32>
    %c1_145 = arith.constant 1 : index
    %c0_146 = arith.constant 0 : index
    %c0_147 = arith.constant 0 : index
    %413 = vector.load %arg6[%c1_145, %c0_146, %c0_147] : memref<2x32x32xf32, #tpu.memory_space<vmem>>, vector<1x32x32xf32>
    %414 = vector.shape_cast %413 : vector<1x32x32xf32> to vector<32x32xf32>
    %cst_148 = arith.constant dense<0.000000e+00> : vector<16x32xf32>
    %415 = tpu.matmul %412, %414, %cst_148 {dimension_numbers = #tpu.dot_dimension_numbers<[1], [0], [0], [1], [0, 0, 1, 1], [], []>} : vector<16x32xf32>, vector<32x32xf32>, vector<16x32xf32> -> vector<16x32xf32>
    %c1_149 = arith.constant 1 : index
    %c0_150 = arith.constant 0 : index
    %c0_151 = arith.constant 0 : index
    %416 = vector.load %arg7[%c1_149, %c0_150, %c0_151] : memref<2x1x32xf32, #tpu.memory_space<vmem>>, vector<1x1x32xf32>
    %417 = vector.shape_cast %416 : vector<1x1x32xf32> to vector<1x32xf32>
    %418 = vector.broadcast %417 : vector<1x32xf32> to vector<16x32xf32>
    %419 = arith.addf %415, %418 : vector<16x32xf32>
    %420 = arith.addf %419, %262 : vector<16x32xf32>
    %c1_152 = arith.constant 1 : index
    %c0_153 = arith.constant 0 : index
    %c0_154 = arith.constant 0 : index
    %421 = vector.load %arg8[%c1_152, %c0_153, %c0_154] : memref<2x1x32xf32, #tpu.memory_space<vmem>>, vector<1x1x32xf32>
    %422 = vector.shape_cast %421 : vector<1x1x32xf32> to vector<1x32xf32>
    %c1_155 = arith.constant 1 : index
    %c0_156 = arith.constant 0 : index
    %c0_157 = arith.constant 0 : index
    %423 = vector.load %arg9[%c1_155, %c0_156, %c0_157] : memref<2x1x32xf32, #tpu.memory_space<vmem>>, vector<1x1x32xf32>
    %424 = vector.shape_cast %423 : vector<1x1x32xf32> to vector<1x32xf32>
    %cst_158 = arith.constant dense<0.000000e+00> : vector<16xf32>
    %425 = vector.multi_reduction <add>, %420, %cst_158 [1] : vector<16x32xf32> to vector<16xf32>
    %426 = vector.shape_cast %425 : vector<16xf32> to vector<16x1xf32>
    %cst_159 = arith.constant 3.200000e+01 : f32
    %427 = vector.broadcast %cst_159 : f32 to vector<16x1xf32>
    %428 = arith.divf %426, %427 : vector<16x1xf32>
    %429 = vector.broadcast %428 : vector<16x1xf32> to vector<16x32xf32>
    %430 = arith.subf %420, %429 : vector<16x32xf32>
    %431 = arith.mulf %430, %430 : vector<16x32xf32>
    %cst_160 = arith.constant dense<0.000000e+00> : vector<16xf32>
    %432 = vector.multi_reduction <add>, %431, %cst_160 [1] : vector<16x32xf32> to vector<16xf32>
    %433 = vector.shape_cast %432 : vector<16xf32> to vector<16x1xf32>
    %cst_161 = arith.constant 3.200000e+01 : f32
    %434 = vector.broadcast %cst_161 : f32 to vector<16x1xf32>
    %435 = arith.divf %433, %434 : vector<16x1xf32>
    %cst_162 = arith.constant 9.99999996E-13 : f32
    %436 = vector.broadcast %cst_162 : f32 to vector<16x1xf32>
    %437 = arith.addf %435, %436 : vector<16x1xf32>
    %438 = math.rsqrt %437 : vector<16x1xf32>
    %439 = vector.broadcast %428 : vector<16x1xf32> to vector<16x32xf32>
    %440 = arith.subf %420, %439 : vector<16x32xf32>
    %441 = vector.broadcast %438 : vector<16x1xf32> to vector<16x32xf32>
    %442 = arith.mulf %440, %441 : vector<16x32xf32>
    %443 = vector.broadcast %422 : vector<1x32xf32> to vector<16x32xf32>
    %444 = arith.mulf %442, %443 : vector<16x32xf32>
    %445 = vector.broadcast %424 : vector<1x32xf32> to vector<16x32xf32>
    %446 = arith.addf %444, %445 : vector<16x32xf32>
    %c1_163 = arith.constant 1 : index
    %c0_164 = arith.constant 0 : index
    %c0_165 = arith.constant 0 : index
    %447 = vector.load %arg10[%c1_163, %c0_164, %c0_165] : memref<2x32x64xf32, #tpu.memory_space<vmem>>, vector<1x32x64xf32>
    %448 = vector.shape_cast %447 : vector<1x32x64xf32> to vector<32x64xf32>
    %cst_166 = arith.constant dense<0.000000e+00> : vector<16x64xf32>
    %449 = tpu.matmul %446, %448, %cst_166 {dimension_numbers = #tpu.dot_dimension_numbers<[1], [0], [0], [1], [0, 0, 1, 1], [], []>} : vector<16x32xf32>, vector<32x64xf32>, vector<16x64xf32> -> vector<16x64xf32>
    %c1_167 = arith.constant 1 : index
    %c0_168 = arith.constant 0 : index
    %c0_169 = arith.constant 0 : index
    %450 = vector.load %arg11[%c1_167, %c0_168, %c0_169] : memref<2x1x64xf32, #tpu.memory_space<vmem>>, vector<1x1x64xf32>
    %451 = vector.shape_cast %450 : vector<1x1x64xf32> to vector<1x64xf32>
    %452 = vector.broadcast %451 : vector<1x64xf32> to vector<16x64xf32>
    %453 = arith.addf %449, %452 : vector<16x64xf32>
    %cst_170 = arith.constant 5.000000e-01 : f32
    %454 = vector.broadcast %cst_170 : f32 to vector<16x64xf32>
    %455 = arith.mulf %454, %453 : vector<16x64xf32>
    %cst_171 = arith.constant 4.471500e-02 : f32
    %456 = vector.broadcast %cst_171 : f32 to vector<16x64xf32>
    %457 = arith.mulf %456, %453 : vector<16x64xf32>
    %458 = arith.mulf %457, %453 : vector<16x64xf32>
    %459 = arith.mulf %458, %453 : vector<16x64xf32>
    %460 = arith.addf %453, %459 : vector<16x64xf32>
    %cst_172 = arith.constant 0.797884583 : f32
    %461 = vector.broadcast %cst_172 : f32 to vector<16x64xf32>
    %462 = arith.mulf %461, %460 : vector<16x64xf32>
    %463 = math.tanh %462 : vector<16x64xf32>
    %cst_173 = arith.constant 1.000000e+00 : f32
    %464 = vector.broadcast %cst_173 : f32 to vector<16x64xf32>
    %465 = arith.addf %464, %463 : vector<16x64xf32>
    %466 = arith.mulf %455, %465 : vector<16x64xf32>
    %c1_174 = arith.constant 1 : index
    %c0_175 = arith.constant 0 : index
    %c0_176 = arith.constant 0 : index
    %467 = vector.load %arg12[%c1_174, %c0_175, %c0_176] : memref<2x64x32xf32, #tpu.memory_space<vmem>>, vector<1x64x32xf32>
    %468 = vector.shape_cast %467 : vector<1x64x32xf32> to vector<64x32xf32>
    %cst_177 = arith.constant dense<0.000000e+00> : vector<16x32xf32>
    %469 = tpu.matmul %466, %468, %cst_177 {dimension_numbers = #tpu.dot_dimension_numbers<[1], [0], [0], [1], [0, 0, 1, 1], [], []>} : vector<16x64xf32>, vector<64x32xf32>, vector<16x32xf32> -> vector<16x32xf32>
    %c1_178 = arith.constant 1 : index
    %c0_179 = arith.constant 0 : index
    %c0_180 = arith.constant 0 : index
    %470 = vector.load %arg13[%c1_178, %c0_179, %c0_180] : memref<2x1x32xf32, #tpu.memory_space<vmem>>, vector<1x1x32xf32>
    %471 = vector.shape_cast %470 : vector<1x1x32xf32> to vector<1x32xf32>
    %472 = vector.broadcast %471 : vector<1x32xf32> to vector<16x32xf32>
    %473 = arith.addf %469, %472 : vector<16x32xf32>
    %474 = arith.addf %473, %446 : vector<16x32xf32>
    %c1_181 = arith.constant 1 : index
    %c0_182 = arith.constant 0 : index
    %c0_183 = arith.constant 0 : index
    %475 = vector.load %arg14[%c1_181, %c0_182, %c0_183] : memref<2x1x32xf32, #tpu.memory_space<vmem>>, vector<1x1x32xf32>
    %476 = vector.shape_cast %475 : vector<1x1x32xf32> to vector<1x32xf32>
    %c1_184 = arith.constant 1 : index
    %c0_185 = arith.constant 0 : index
    %c0_186 = arith.constant 0 : index
    %477 = vector.load %arg15[%c1_184, %c0_185, %c0_186] : memref<2x1x32xf32, #tpu.memory_space<vmem>>, vector<1x1x32xf32>
    %478 = vector.shape_cast %477 : vector<1x1x32xf32> to vector<1x32xf32>
    %cst_187 = arith.constant dense<0.000000e+00> : vector<16xf32>
    %479 = vector.multi_reduction <add>, %474, %cst_187 [1] : vector<16x32xf32> to vector<16xf32>
    %480 = vector.shape_cast %479 : vector<16xf32> to vector<16x1xf32>
    %cst_188 = arith.constant 3.200000e+01 : f32
    %481 = vector.broadcast %cst_188 : f32 to vector<16x1xf32>
    %482 = arith.divf %480, %481 : vector<16x1xf32>
    %483 = vector.broadcast %482 : vector<16x1xf32> to vector<16x32xf32>
    %484 = arith.subf %474, %483 : vector<16x32xf32>
    %485 = arith.mulf %484, %484 : vector<16x32xf32>
    %cst_189 = arith.constant dense<0.000000e+00> : vector<16xf32>
    %486 = vector.multi_reduction <add>, %485, %cst_189 [1] : vector<16x32xf32> to vector<16xf32>
    %487 = vector.shape_cast %486 : vector<16xf32> to vector<16x1xf32>
    %cst_190 = arith.constant 3.200000e+01 : f32
    %488 = vector.broadcast %cst_190 : f32 to vector<16x1xf32>
    %489 = arith.divf %487, %488 : vector<16x1xf32>
    %cst_191 = arith.constant 9.99999996E-13 : f32
    %490 = vector.broadcast %cst_191 : f32 to vector<16x1xf32>
    %491 = arith.addf %489, %490 : vector<16x1xf32>
    %492 = math.rsqrt %491 : vector<16x1xf32>
    %493 = vector.broadcast %482 : vector<16x1xf32> to vector<16x32xf32>
    %494 = arith.subf %474, %493 : vector<16x32xf32>
    %495 = vector.broadcast %492 : vector<16x1xf32> to vector<16x32xf32>
    %496 = arith.mulf %494, %495 : vector<16x32xf32>
    %497 = vector.broadcast %476 : vector<1x32xf32> to vector<16x32xf32>
    %498 = arith.mulf %496, %497 : vector<16x32xf32>
    %499 = vector.broadcast %478 : vector<1x32xf32> to vector<16x32xf32>
    %500 = arith.addf %498, %499 : vector<16x32xf32>
    %c0_192 = arith.constant 0 : index
    %c0_193 = arith.constant 0 : index
    %501 = vector.load %arg18[%c0_192, %c0_193] : memref<16x32xf32, #tpu.memory_space<vmem>>, vector<16x32xf32>
    tpu.vector_store %arg18[%c0_192, %c0_193], %500 {strides = array<i32>} : memref<16x32xf32, #tpu.memory_space<vmem>>, vector<16x32xf32>,
    %502 = vector.extract_strided_slice %500 {offsets = [0, 0], sizes = [1, 32], strides = [1, 1]} : vector<16x32xf32> to vector<1x32xf32>
    %503 = vector.extract_strided_slice %500 {offsets = [8, 0], sizes = [1, 32], strides = [1, 1]} : vector<16x32xf32> to vector<1x32xf32>
    %504 = tpu.concatenate %502, %503 in 0 : vector<1x32xf32>, vector<1x32xf32> -> vector<2x32xf32>
    %c0_194 = arith.constant 0 : index
    %c0_195 = arith.constant 0 : index
    %505 = vector.load %arg16[%c0_194, %c0_195] : memref<32x32xf32, #tpu.memory_space<vmem>>, vector<32x32xf32>
    %cst_196 = arith.constant dense<0.000000e+00> : vector<2x32xf32>
    %506 = tpu.matmul %504, %505, %cst_196 {dimension_numbers = #tpu.dot_dimension_numbers<[1], [0], [0], [1], [0, 0, 1, 1], [], []>} : vector<2x32xf32>, vector<32x32xf32>, vector<2x32xf32> -> vector<2x32xf32>
    %c0_197 = arith.constant 0 : index
    %c0_198 = arith.constant 0 : index
    %507 = vector.load %arg17[%c0_197, %c0_198] : memref<1x32xf32, #tpu.memory_space<vmem>>, vector<1x32xf32>
    %508 = vector.broadcast %507 : vector<1x32xf32> to vector<2x32xf32>
    %509 = arith.addf %506, %508 : vector<2x32xf32>
    %510 = math.tanh %509 : vector<2x32xf32>
    %c0_199 = arith.constant 0 : index
    %c0_200 = arith.constant 0 : index
    %511 = vector.load %arg19[%c0_199, %c0_200] : memref<2x32xf32, #tpu.memory_space<vmem>>, vector<2x32xf32>
    tpu.vector_store %arg19[%c0_199, %c0_200], %510 {strides = array<i32>} : memref<2x32xf32, #tpu.memory_space<vmem>>, vector<2x32xf32>,
    return
  }
}

</mosaic_0001>

<llo_original>
// kernel: encoder_forward.1
$region0: #{encoder_forward.1}
  #allocation0 [shape = 'u32[]', space=smem, size = 0x4, offset = 0x4, fixed_abs, tag = 'smem constant byte address 0x4 - core index']
  #allocation1 [shape = 'u32[72,128]{1,0:T(1,128)}', space=vmem, size = 0x9000, scoped, tag = 'internal scratch']
  %s0 = inlined_call_operand.vmem [shape: f32[16,32], index: 0, kind: input, shape index: {}]
  %s1 = inlined_call_operand.vmem [shape: f32[2,1,8], index: 1, kind: input, shape index: {}]
  %s2 = inlined_call_operand.vmem [shape: f32[1,32], index: 2, kind: input, shape index: {}]
  %s3 = inlined_call_operand.vmem [shape: f32[1,32], index: 3, kind: input, shape index: {}]
  %s4 = inlined_call_operand.vmem [shape: f32[2,32,96], index: 4, kind: input, shape index: {}]
  %s5 = inlined_call_operand.vmem [shape: f32[2,1,96], index: 5, kind: input, shape index: {}]
  %s6 = inlined_call_operand.vmem [shape: f32[2,32,32], index: 6, kind: input, shape index: {}]
  %s7 = inlined_call_operand.vmem [shape: f32[2,1,32], index: 7, kind: input, shape index: {}]
  %s8 = inlined_call_operand.vmem [shape: f32[2,1,32], index: 8, kind: input, shape index: {}]
  %s9 = inlined_call_operand.vmem [shape: f32[2,1,32], index: 9, kind: input, shape index: {}]
  %s10 = inlined_call_operand.vmem [shape: f32[2,32,64], index: 10, kind: input, shape index: {}]
  %s11 = inlined_call_operand.vmem [shape: f32[2,1,64], index: 11, kind: input, shape index: {}]
  %s12 = inlined_call_operand.vmem [shape: f32[2,64,32], index: 12, kind: input, shape index: {}]
  %s13 = inlined_call_operand.vmem [shape: f32[2,1,32], index: 13, kind: input, shape index: {}]
  %s14 = inlined_call_operand.vmem [shape: f32[2,1,32], index: 14, kind: input, shape index: {}]
  %s15 = inlined_call_operand.vmem [shape: f32[2,1,32], index: 15, kind: input, shape index: {}]
  %s16 = inlined_call_operand.vmem [shape: f32[32,32], index: 16, kind: input, shape index: {}]
  %s17 = inlined_call_operand.vmem [shape: f32[1,32], index: 17, kind: input, shape index: {}]
  %s18 = inlined_call_operand.hbm [shape: f32[16,32], index: 18, kind: output, shape index: {0}]
  %s19 = inlined_call_operand.hbm [shape: f32[2,32], index: 19, kind: output, shape index: {1}]
  %20 = xla_tuple %s18, %s19
  %s21 = sld [smem:[#allocation0]]
  $region90: #{encoder_forward.1} parent=0
    _
  %s23 = ssub.s32 1, %s21
  %s24 = scalar_select 0, %s23, %s21
  $region1: #{encoder_forward.1} parent=0
    #allocation2 [shape = 'u8[8192]{0}', space=vmem, size = 0x2000, scoped, tag = 'output window, operand 0, single buffered']
    #allocation3 [shape = 's32[1]{0}', space=sflag, size = 0x4, scoped, tag = 'scoped memory for encoder_forward.1']
    #allocation4 [shape = 'u8[1024]{0}', space=vmem, size = 0x400, scoped, tag = 'output window, operand 1, single buffered']
    #allocation5 [shape = 's32[1]{0}', space=sflag, size = 0x4, scoped, tag = 'scoped memory for encoder_forward.1']
    %25 = vsyncpa [#allocation3], 0
    %26 = vsyncpa [#allocation5], 0
    // Predicated region
    $region2: #{encoder_forward.1} parent=1 // pred_check
      _
    $region3: #{encoder_forward.1} parent=1 // pred_check_branch
      %28 = sbr.rel (0) target = $region5
    $region4: #{encoder_forward.1} parent=1 // pred_region
      _
    $region5: #{encoder_forward.1} parent=1 // pred_fallthru
      _
    // Predicated region
    $region6: #{encoder_forward.1} parent=1 // pred_check
      _
    $region7: #{encoder_forward.1} parent=1 // pred_check_branch
      %30 = sbr.rel (0) target = $region9
    $region8: #{encoder_forward.1} parent=1 // pred_region
      _
    $region9: #{encoder_forward.1} parent=1 // pred_fallthru
      _
    // Predicated region
    $region10: #{encoder_forward.1} parent=1 // pred_check
      _
    $region11: #{encoder_forward.1} parent=1 // pred_check_branch
      %32 = sbr.rel (0) target = $region13
    $region12: #{encoder_forward.1} parent=1 // pred_region
      _
    $region13: #{encoder_forward.1} parent=1 // pred_fallthru
      _
    // Predicated region
    $region14: #{encoder_forward.1} parent=1 // pred_check
      _
    $region15: #{encoder_forward.1} parent=1 // pred_check_branch
      %34 = sbr.rel (0) target = $region17
    $region16: #{encoder_forward.1} parent=1 // pred_region
      _
    $region17: #{encoder_forward.1} parent=1 // pred_fallthru
      _
    // Predicated region
    $region18: #{encoder_forward.1} parent=1 // pred_check
      _
    $region19: #{encoder_forward.1} parent=1 // pred_check_branch
      %36 = sbr.rel (0) target = $region21
    $region20: #{encoder_forward.1} parent=1 // pred_region
      _
    $region21: #{encoder_forward.1} parent=1 // pred_fallthru
      _
    // Predicated region
    $region22: #{encoder_forward.1} parent=1 // pred_check
      _
    $region23: #{encoder_forward.1} parent=1 // pred_check_branch
      %38 = sbr.rel (0) target = $region25
    $region24: #{encoder_forward.1} parent=1 // pred_region
      _
    $region25: #{encoder_forward.1} parent=1 // pred_fallthru
      _
    // Predicated region
    $region26: #{encoder_forward.1} parent=1 // pred_check
      _
    $region27: #{encoder_forward.1} parent=1 // pred_check_branch
      %40 = sbr.rel (0) target = $region29
    $region28: #{encoder_forward.1} parent=1 // pred_region
      _
    $region29: #{encoder_forward.1} parent=1 // pred_fallthru
      _
    // Predicated region
    $region30: #{encoder_forward.1} parent=1 // pred_check
      _
    $region31: #{encoder_forward.1} parent=1 // pred_check_branch
      %42 = sbr.rel (0) target = $region33
    $region32: #{encoder_forward.1} parent=1 // pred_region
      _
    $region33: #{encoder_forward.1} parent=1 // pred_fallthru
      _
    // Predicated region
    $region34: #{encoder_forward.1} parent=1 // pred_check
      _
    $region35: #{encoder_forward.1} parent=1 // pred_check_branch
      %44 = sbr.rel (0) target = $region37
    $region36: #{encoder_forward.1} parent=1 // pred_region
      _
    $region37: #{encoder_forward.1} parent=1 // pred_fallthru
      _
    // Predicated region
    $region38: #{encoder_forward.1} parent=1 // pred_check
      _
    $region39: #{encoder_forward.1} parent=1 // pred_check_branch
      %46 = sbr.rel (0) target = $region41
    $region40: #{encoder_forward.1} parent=1 // pred_region
      _
    $region41: #{encoder_forward.1} parent=1 // pred_fallthru
      _
    // Predicated region
    $region42: #{encoder_forward.1} parent=1 // pred_check
      _
    $region43: #{encoder_forward.1} parent=1 // pred_check_branch
      %48 = sbr.rel (0) target = $region45
    $region44: #{encoder_forward.1} parent=1 // pred_region
      _
    $region45: #{encoder_forward.1} parent=1 // pred_fallthru
      _
    // Predicated region
    $region46: #{encoder_forward.1} parent=1 // pred_check
      _
    $region47: #{encoder_forward.1} parent=1 // pred_check_branch
      %50 = sbr.rel (0) target = $region49
    $region48: #{encoder_forward.1} parent=1 // pred_region
      _
    $region49: #{encoder_forward.1} parent=1 // pred_fallthru
      _
    // Predicated region
    $region50: #{encoder_forward.1} parent=1 // pred_check
      _
    $region51: #{encoder_forward.1} parent=1 // pred_check_branch
      %52 = sbr.rel (0) target = $region53
    $region52: #{encoder_forward.1} parent=1 // pred_region
      _
    $region53: #{encoder_forward.1} parent=1 // pred_fallthru
      _
    // Predicated region
    $region54: #{encoder_forward.1} parent=1 // pred_check
      _
    $region55: #{encoder_forward.1} parent=1 // pred_check_branch
      %54 = sbr.rel (0) target = $region57
    $region56: #{encoder_forward.1} parent=1 // pred_region
      _
    $region57: #{encoder_forward.1} parent=1 // pred_fallthru
      _
    // Predicated region
    $region58: #{encoder_forward.1} parent=1 // pred_check
      _
    $region59: #{encoder_forward.1} parent=1 // pred_check_branch
      %56 = sbr.rel (0) target = $region61
    $region60: #{encoder_forward.1} parent=1 // pred_region
      _
    $region61: #{encoder_forward.1} parent=1 // pred_fallthru
      _
    // Predicated region
    $region62: #{encoder_forward.1} parent=1 // pred_check
      _
    $region63: #{encoder_forward.1} parent=1 // pred_check_branch
      %58 = sbr.rel (0) target = $region65
    $region64: #{encoder_forward.1} parent=1 // pred_region
      _
    $region65: #{encoder_forward.1} parent=1 // pred_fallthru
      _
    // Predicated region
    $region66: #{encoder_forward.1} parent=1 // pred_check
      _
    $region67: #{encoder_forward.1} parent=1 // pred_check_branch
      %60 = sbr.rel (0) target = $region69
    $region68: #{encoder_forward.1} parent=1 // pred_region
      _
    $region69: #{encoder_forward.1} parent=1 // pred_fallthru
      _
    // Predicated region
    $region70: #{encoder_forward.1} parent=1 // pred_check
      _
    $region71: #{encoder_forward.1} parent=1 // pred_check_branch
      %62 = sbr.rel (0) target = $region73
    $region72: #{encoder_forward.1} parent=1 // pred_region
      _
    $region73: #{encoder_forward.1} parent=1 // pred_fallthru
      _
    %v63 = vld [vmem:[%s0] sm:$0xff]
    %v64 = vld [vmem:[%s0 + $0x8] sm:$0xff]
    %v65 = vld [vmem:[%s2] sm:$0x1]
    %v66 = vld [vmem:[%s3] sm:$0x1]
    %vm67 = vcmask 261120
    %v68 = vsel %vm67, %v63, 0.0
    %69 = vadd.xlane.f32.xlu0 %v68
    %v70 = vpop.xlane.xlu0 %69
    %v71 = vsel %vm67, %v64, 0.0
    %72 = vadd.xlane.f32.xlu0 %v71
    %v73 = vpop.xlane.xlu0 %72
    %v74 = vrcp.pop 32.0
    %v75 = vmul.f32 32.0, %v74
    %v76 = vsub.f32 1.0, %v75
    %v77 = vmul.f32 %v74, %v76
    %v78 = vadd.f32 %v74, %v77
    %vm79 = vweird.f32 %v74
    %v80 = vsel %vm79, %v74, %v78
    %v81 = vmul.f32 %v70, %v80
    %v82 = vmul.f32 %v73, %v80
    %v83 = vsub.f32 %v63, %v81
    %v84 = vsub.f32 %v64, %v82
    %v85 = vmul.f32 %v83, %v83
    %v86 = vmul.f32 %v84, %v84
    %v87 = vsel %vm67, %v85, 0.0
    %88 = vadd.xlane.f32.xlu0 %v87
    %v89 = vpop.xlane.xlu0 %88
    %v90 = vsel %vm67, %v86, 0.0
    %91 = vadd.xlane.f32.xlu0 %v90
    %v92 = vpop.xlane.xlu0 %91
    %v93 = vmul.f32 %v89, %v80
    %v94 = vmul.f32 %v92, %v80
    %v95 = vadd.f32 %v93, 1e-12
    %v96 = vadd.f32 %v94, 1e-12
    %v97 = vrsqrt.pop %v95
    %v98 = vmul.f32 %v97, %v95
    %v99 = vmul.f32 %v98, %v97
    %v100 = vmul.f32 0.5, %v99
    %v101 = vsub.f32 1.5, %v100
    %v102 = vmul.f32 %v97, %v101
    %vm103 = vweird.f32 %v95
    %vm104 = vweird.f32 %v97
    %vm105 = vmor %vm103, %vm104
    %v106 = vsel %vm105, %v97, %v102
    %v107 = vrsqrt.pop %v96
    %v108 = vmul.f32 %v107, %v96
    %v109 = vmul.f32 %v108, %v107
    %v110 = vmul.f32 0.5, %v109
    %v111 = vsub.f32 1.5, %v110
    %v112 = vmul.f32 %v107, %v111
    %vm113 = vweird.f32 %v96
    %vm114 = vweird.f32 %v107
    %vm115 = vmor %vm113, %vm114
    %v116 = vsel %vm115, %v107, %v112
    %v117 = vmul.f32 %v83, %v106
    %v118 = vmul.f32 %v84, %v116
    %v120 = vperm.slane %v65, 0
    %v122 = vmul.f32 %v117, %v120
    %v123 = vmul.f32 %v118, %v120
    %v125 = vperm.slane %v66, 0
    %v127 = vadd.f32 %v122, %v125
    %v128 = vadd.f32 %v123, %v125
    %v129 = vld [vmem:[%s4] sm:$0xff]
    %v130 = vld [vmem:[%s4 + $0x8] sm:$0xff]
    %v131 = vld [vmem:[%s4 + $0x10] sm:$0xff]
    %v132 = vld [vmem:[%s4 + $0x18] sm:$0xff]
    %v133 = vld [vmem:[%s5] sm:$0x1]
    %v135 = vperm.slane %v133, 0
    %v138 = vsel %vm67, %v127, 0
    %v141 = vsel %vm67, %v128, 0
    %143 = vmatpush.msra.mxu0 0.0
    %144 = vmatpush.msra.mxu0 0.0
    %145 = vmatpush.msra.mxu0 0.0
    %146 = vmatpush.msra.mxu0 0.0
    %147 = vmatpush.msra.mxu0 0.0
    %148 = vmatpush.msra.mxu0 0.0
    %149 = vmatpush.msra.mxu0 0.0
    %150 = vmatpush.msra.mxu0 0.0
    %151 = vmatpush.msra.mxu0 0.0
    %152 = vmatpush.msra.mxu0 0.0
    %153 = vmatpush.msra.mxu0 0.0
    %154 = vmatpush.msra.mxu0 0.0
    %155 = vmatpush.msra.mxu0 %v132
    %156 = vmatpush.msra.mxu0 %v131
    %157 = vmatpush.msra.mxu0 %v130
    %158 = vmatpush.msra.mxu0 %v129
    %159 = vmatmul.f32.gmra.mxu0 %v138
    %v160 = vpop.f32.mrf.mxu0
    %v161 = vadd.f32 %v135, %v160
    %162 = vmatmul.f32.gmra.mxu0 %v141
    %v163 = vpop.f32.mrf.mxu0
    %v164 = vadd.f32 %v135, %v163
    %165 = vdwg.mxu0
    %v166 = vld [vmem:[%s1] sm:$0x1]
    %v168 = vperm.slane %v166, 0
    %171 = vrot.lane.b32.xlu0 %v161, 96
    %v172 = vpop.permute.xlu0 %171
    %vm173 = vcmask 64512
    %v174 = vsel %vm173, %v161, 0
    %v176 = vsel %vm173, %v172, 0
    %178 = vmatpush.xpose.msra.mxu0 0.0
    %179 = vmatpush.xpose.msra.mxu0 0.0
    %180 = vmatpush.xpose.msra.mxu0 0.0
    %181 = vmatpush.xpose.msra.mxu0 0.0
    %182 = vmatpush.xpose.msra.mxu0 0.0
    %183 = vmatpush.xpose.msra.mxu0 0.0
    %184 = vmatpush.xpose.msra.mxu0 0.0
    %185 = vmatpush.xpose.msra.mxu0 0.0
    %186 = vmatpush.xpose.msra.mxu0 0.0
    %187 = vmatpush.xpose.msra.mxu0 0.0
    %188 = vmatpush.xpose.msra.mxu0 0.0
    %189 = vmatpush.xpose.msra.mxu0 0.0
    %190 = vmatpush.xpose.msra.mxu0 0.0
    %191 = vmatpush.xpose.msra.mxu0 0.0
    %192 = vmatpush.xpose.msra.mxu0 0.0
    %193 = vmatpush.xpose.msra.mxu0 %v176
    %194 = vmatmul.f32.gmra.mxu0 %v174
    %v195 = vpop.f32.mrf.mxu0
    %v196 = vadd.f32 %v168, %v195
    %197 = vdwg.mxu0
    %v198 = vsel %vm173, %v196, -inf
    %199 = vmax.xlane.f32.xlu0 %v198
    %v200 = vpop.xlane.xlu0 %199
    %v201 = vsub.f32 %v196, %v200
    %v202 = vmul.f32 %v201, 1.442695
    %v203 = vpow.pop %v202
    %v204 = vsel %vm173, %v203, 0.0
    %205 = vadd.xlane.f32.xlu0 %v204
    %v206 = vpop.xlane.xlu0 %205
    %v207 = vrcp.pop %v206
    %v208 = vmul.f32 %v203, %v207
    %209 = vrot.lane.b32.xlu0 %v161, 64
    %v210 = vpop.permute.xlu0 %209
    %v213 = vsel %vm173, %v208, 0
    %215 = vmatpush.msra.mxu0 0.0
    %216 = vmatpush.msra.mxu0 0.0
    %217 = vmatpush.msra.mxu0 0.0
    %218 = vmatpush.msra.mxu0 0.0
    %219 = vmatpush.msra.mxu0 0.0
    %220 = vmatpush.msra.mxu0 0.0
    %221 = vmatpush.msra.mxu0 0.0
    %222 = vmatpush.msra.mxu0 0.0
    %223 = vmatpush.msra.mxu0 0.0
    %224 = vmatpush.msra.mxu0 0.0
    %225 = vmatpush.msra.mxu0 0.0
    %226 = vmatpush.msra.mxu0 0.0
    %227 = vmatpush.msra.mxu0 0.0
    %228 = vmatpush.msra.mxu0 0.0
    %229 = vmatpush.msra.mxu0 0.0
    %230 = vmatpush.msra.mxu0 %v210
    %231 = vmatmul.f32.gmra.mxu0 %v213
    %v232 = vpop.f32.mrf.mxu0
    %v233 = vadd.f32 0.0, %v232
    %234 = vdwg.mxu0
    %235 = vrot.lane.b32.xlu0 %v161, 120
    %v236 = vpop.permute.xlu0 %235
    %237 = vrot.lane.b32.xlu0 %v161, 88
    %v238 = vpop.permute.xlu0 %237
    %v239 = vsel %vm173, %v236, 0
    %v241 = vsel %vm173, %v238, 0
    %243 = vmatpush.xpose.msra.mxu0 0.0
    %244 = vmatpush.xpose.msra.mxu0 0.0
    %245 = vmatpush.xpose.msra.mxu0 0.0
    %246 = vmatpush.xpose.msra.mxu0 0.0
    %247 = vmatpush.xpose.msra.mxu0 0.0
    %248 = vmatpush.xpose.msra.mxu0 0.0
    %249 = vmatpush.xpose.msra.mxu0 0.0
    %250 = vmatpush.xpose.msra.mxu0 0.0
    %251 = vmatpush.xpose.msra.mxu0 0.0
    %252 = vmatpush.xpose.msra.mxu0 0.0
    %253 = vmatpush.xpose.msra.mxu0 0.0
    %254 = vmatpush.xpose.msra.mxu0 0.0
    %255 = vmatpush.xpose.msra.mxu0 0.0
    %256 = vmatpush.xpose.msra.mxu0 0.0
    %257 = vmatpush.xpose.msra.mxu0 0.0
    %258 = vmatpush.xpose.msra.mxu0 %v241
    %259 = vmatmul.f32.gmra.mxu0 %v239
    %v260 = vpop.f32.mrf.mxu0
    %v261 = vadd.f32 %v168, %v260
    %262 = vdwg.mxu0
    %v263 = vsel %vm173, %v261, -inf
    %264 = vmax.xlane.f32.xlu0 %v263
    %v265 = vpop.xlane.xlu0 %264
    %v266 = vsub.f32 %v261, %v265
    %v267 = vmul.f32 %v266, 1.442695
    %v268 = vpow.pop %v267
    %v269 = vsel %vm173, %v268, 0.0
    %270 = vadd.xlane.f32.xlu0 %v269
    %v271 = vpop.xlane.xlu0 %270
    %v272 = vrcp.pop %v271
    %v273 = vmul.f32 %v268, %v272
    %274 = vrot.lane.b32.xlu0 %v161, 56
    %v275 = vpop.permute.xlu0 %274
    %v278 = vsel %vm173, %v273, 0
    %280 = vmatpush.msra.mxu0 0.0
    %281 = vmatpush.msra.mxu0 0.0
    %282 = vmatpush.msra.mxu0 0.0
    %283 = vmatpush.msra.mxu0 0.0
    %284 = vmatpush.msra.mxu0 0.0
    %285 = vmatpush.msra.mxu0 0.0
    %286 = vmatpush.msra.mxu0 0.0
    %287 = vmatpush.msra.mxu0 0.0
    %288 = vmatpush.msra.mxu0 0.0
    %289 = vmatpush.msra.mxu0 0.0
    %290 = vmatpush.msra.mxu0 0.0
    %291 = vmatpush.msra.mxu0 0.0
    %292 = vmatpush.msra.mxu0 0.0
    %293 = vmatpush.msra.mxu0 0.0
    %294 = vmatpush.msra.mxu0 0.0
    %295 = vmatpush.msra.mxu0 %v275
    %296 = vmatmul.f32.gmra.mxu0 %v278
    %v297 = vpop.f32.mrf.mxu0
    %v298 = vadd.f32 0.0, %v297
    %299 = vdwg.mxu0
    %300 = vrot.lane.b32.xlu0 %v161, 112
    %v301 = vpop.permute.xlu0 %300
    %302 = vrot.lane.b32.xlu0 %v161, 80
    %v303 = vpop.permute.xlu0 %302
    %v304 = vsel %vm173, %v301, 0
    %v306 = vsel %vm173, %v303, 0
    %308 = vmatpush.xpose.msra.mxu0 0.0
    %309 = vmatpush.xpose.msra.mxu0 0.0
    %310 = vmatpush.xpose.msra.mxu0 0.0
    %311 = vmatpush.xpose.msra.mxu0 0.0
    %312 = vmatpush.xpose.msra.mxu0 0.0
    %313 = vmatpush.xpose.msra.mxu0 0.0
    %314 = vmatpush.xpose.msra.mxu0 0.0
    %315 = vmatpush.xpose.msra.mxu0 0.0
    %316 = vmatpush.xpose.msra.mxu0 0.0
    %317 = vmatpush.xpose.msra.mxu0 0.0
    %318 = vmatpush.xpose.msra.mxu0 0.0
    %319 = vmatpush.xpose.msra.mxu0 0.0
    %320 = vmatpush.xpose.msra.mxu0 0.0
    %321 = vmatpush.xpose.msra.mxu0 0.0
    %322 = vmatpush.xpose.msra.mxu0 0.0
    %323 = vmatpush.xpose.msra.mxu0 %v306
    %324 = vmatmul.f32.gmra.mxu0 %v304
    %v325 = vpop.f32.mrf.mxu0
    %v326 = vadd.f32 %v168, %v325
    %327 = vdwg.mxu0
    %v328 = vsel %vm173, %v326, -inf
    %329 = vmax.xlane.f32.xlu0 %v328
    %v330 = vpop.xlane.xlu0 %329
    %v331 = vsub.f32 %v326, %v330
    %v332 = vmul.f32 %v331, 1.442695
    %v333 = vpow.pop %v332
    %v334 = vsel %vm173, %v333, 0.0
    %335 = vadd.xlane.f32.xlu0 %v334
    %v336 = vpop.xlane.xlu0 %335
    %v337 = vrcp.pop %v336
    %v338 = vmul.f32 %v333, %v337
    %339 = vrot.lane.b32.xlu0 %v161, 48
    %v340 = vpop.permute.xlu0 %339
    %v343 = vsel %vm173, %v338, 0
    %345 = vmatpush.msra.mxu0 0.0
    %346 = vmatpush.msra.mxu0 0.0
    %347 = vmatpush.msra.mxu0 0.0
    %348 = vmatpush.msra.mxu0 0.0
    %349 = vmatpush.msra.mxu0 0.0
    %350 = vmatpush.msra.mxu0 0.0
    %351 = vmatpush.msra.mxu0 0.0
    %352 = vmatpush.msra.mxu0 0.0
    %353 = vmatpush.msra.mxu0 0.0
    %354 = vmatpush.msra.mxu0 0.0
    %355 = vmatpush.msra.mxu0 0.0
    %356 = vmatpush.msra.mxu0 0.0
    %357 = vmatpush.msra.mxu0 0.0
    %358 = vmatpush.msra.mxu0 0.0
    %359 = vmatpush.msra.mxu0 0.0
    %360 = vmatpush.msra.mxu0 %v340
    %361 = vmatmul.f32.gmra.mxu0 %v343
    %v362 = vpop.f32.mrf.mxu0
    %v363 = vadd.f32 0.0, %v362
    %364 = vdwg.mxu0
    %365 = vrot.lane.b32.xlu0 %v161, 104
    %v366 = vpop.permute.xlu0 %365
    %367 = vrot.lane.b32.xlu0 %v161, 72
    %v368 = vpop.permute.xlu0 %367
    %v369 = vsel %vm173, %v366, 0
    %v371 = vsel %vm173, %v368, 0
    %373 = vmatpush.xpose.msra.mxu0 0.0
    %374 = vmatpush.xpose.msra.mxu0 0.0
    %375 = vmatpush.xpose.msra.mxu0 0.0
    %376 = vmatpush.xpose.msra.mxu0 0.0
    %377 = vmatpush.xpose.msra.mxu0 0.0
    %378 = vmatpush.xpose.msra.mxu0 0.0
    %379 = vmatpush.xpose.msra.mxu0 0.0
    %380 = vmatpush.xpose.msra.mxu0 0.0
    %381 = vmatpush.xpose.msra.mxu0 0.0
    %382 = vmatpush.xpose.msra.mxu0 0.0
    %383 = vmatpush.xpose.msra.mxu0 0.0
    %384 = vmatpush.xpose.msra.mxu0 0.0
    %385 = vmatpush.xpose.msra.mxu0 0.0
    %386 = vmatpush.xpose.msra.mxu0 0.0
    %387 = vmatpush.xpose.msra.mxu0 0.0
    %388 = vmatpush.xpose.msra.mxu0 %v371
    %389 = vmatmul.f32.gmra.mxu0 %v369
    %v390 = vpop.f32.mrf.mxu0
    %v391 = vadd.f32 %v168, %v390
    %392 = vdwg.mxu0
    %v393 = vsel %vm173, %v391, -inf
    %394 = vmax.xlane.f32.xlu0 %v393
    %v395 = vpop.xlane.xlu0 %394
    %v396 = vsub.f32 %v391, %v395
    %v397 = vmul.f32 %v396, 1.442695
    %v398 = vpow.pop %v397
    %v399 = vsel %vm173, %v398, 0.0
    %400 = vadd.xlane.f32.xlu0 %v399
    %v401 = vpop.xlane.xlu0 %400
    %v402 = vrcp.pop %v401
    %v403 = vmul.f32 %v398, %v402
    %404 = vrot.lane.b32.xlu0 %v161, 40
    %v405 = vpop.permute.xlu0 %404
    %v408 = vsel %vm173, %v403, 0
    %410 = vmatpush.msra.mxu0 0.0
    %411 = vmatpush.msra.mxu0 0.0
    %412 = vmatpush.msra.mxu0 0.0
    %413 = vmatpush.msra.mxu0 0.0
    %414 = vmatpush.msra.mxu0 0.0
    %415 = vmatpush.msra.mxu0 0.0
    %416 = vmatpush.msra.mxu0 0.0
    %417 = vmatpush.msra.mxu0 0.0
    %418 = vmatpush.msra.mxu0 0.0
    %419 = vmatpush.msra.mxu0 0.0
    %420 = vmatpush.msra.mxu0 0.0
    %421 = vmatpush.msra.mxu0 0.0
    %422 = vmatpush.msra.mxu0 0.0
    %423 = vmatpush.msra.mxu0 0.0
    %424 = vmatpush.msra.mxu0 0.0
    %425 = vmatpush.msra.mxu0 %v405
    %426 = vmatmul.f32.gmra.mxu0 %v408
    %v427 = vpop.f32.mrf.mxu0
    %v428 = vadd.f32 0.0, %v427
    %429 = vdwg.mxu0
    %431 = vrot.lane.b32.xlu0 %v298, 8
    %v432 = vpop.permute.xlu0 %431
    %435 = vrot.lane.b32.xlu0 %v363, 16
    %v436 = vpop.permute.xlu0 %435
    %439 = vrot.lane.b32.xlu0 %v428, 24
    %v440 = vpop.permute.xlu0 %439
    %v442 = vsel %vm173, %v233, %v432
    %vm443 = vcmask 130048
    %v444 = vsel %vm443, %v442, %v436
    %vm445 = vcmask 195584
    %v446 = vsel %vm445, %v444, %v440
    %s447 = scalar_lea.vmem %s1, 1
    %v448 = vld [vmem:[%s447] sm:$0x1]
    %v450 = vperm.slane %v448, 0
    %453 = vrot.lane.b32.xlu0 %v164, 96
    %v454 = vpop.permute.xlu0 %453
    %v455 = vsel %vm173, %v164, 0
    %v457 = vsel %vm173, %v454, 0
    %459 = vmatpush.xpose.msra.mxu0 0.0
    %460 = vmatpush.xpose.msra.mxu0 0.0
    %461 = vmatpush.xpose.msra.mxu0 0.0
    %462 = vmatpush.xpose.msra.mxu0 0.0
    %463 = vmatpush.xpose.msra.mxu0 0.0
    %464 = vmatpush.xpose.msra.mxu0 0.0
    %465 = vmatpush.xpose.msra.mxu0 0.0
    %466 = vmatpush.xpose.msra.mxu0 0.0
    %467 = vmatpush.xpose.msra.mxu0 0.0
    %468 = vmatpush.xpose.msra.mxu0 0.0
    %469 = vmatpush.xpose.msra.mxu0 0.0
    %470 = vmatpush.xpose.msra.mxu0 0.0
    %471 = vmatpush.xpose.msra.mxu0 0.0
    %472 = vmatpush.xpose.msra.mxu0 0.0
    %473 = vmatpush.xpose.msra.mxu0 0.0
    %474 = vmatpush.xpose.msra.mxu0 %v457
    %475 = vmatmul.f32.gmra.mxu0 %v455
    %v476 = vpop.f32.mrf.mxu0
    %v477 = vadd.f32 %v450, %v476
    %478 = vdwg.mxu0
    %v479 = vsel %vm173, %v477, -inf
    %480 = vmax.xlane.f32.xlu0 %v479
    %v481 = vpop.xlane.xlu0 %480
    %v482 = vsub.f32 %v477, %v481
    %v483 = vmul.f32 %v482, 1.442695
    %v484 = vpow.pop %v483
    %v485 = vsel %vm173, %v484, 0.0
    %486 = vadd.xlane.f32.xlu0 %v485
    %v487 = vpop.xlane.xlu0 %486
    %v488 = vrcp.pop %v487
    %v489 = vmul.f32 %v484, %v488
    %490 = vrot.lane.b32.xlu0 %v164, 64
    %v491 = vpop.permute.xlu0 %490
    %v494 = vsel %vm173, %v489, 0
    %496 = vmatpush.msra.mxu0 0.0
    %497 = vmatpush.msra.mxu0 0.0
    %498 = vmatpush.msra.mxu0 0.0
    %499 = vmatpush.msra.mxu0 0.0
    %500 = vmatpush.msra.mxu0 0.0
    %501 = vmatpush.msra.mxu0 0.0
    %502 = vmatpush.msra.mxu0 0.0
    %503 = vmatpush.msra.mxu0 0.0
    %504 = vmatpush.msra.mxu0 0.0
    %505 = vmatpush.msra.mxu0 0.0
    %506 = vmatpush.msra.mxu0 0.0
    %507 = vmatpush.msra.mxu0 0.0
    %508 = vmatpush.msra.mxu0 0.0
    %509 = vmatpush.msra.mxu0 0.0
    %510 = vmatpush.msra.mxu0 0.0
    %511 = vmatpush.msra.mxu0 %v491
    %512 = vmatmul.f32.gmra.mxu0 %v494
    %v513 = vpop.f32.mrf.mxu0
    %v514 = vadd.f32 0.0, %v513
    %515 = vdwg.mxu0
    %516 = vrot.lane.b32.xlu0 %v164, 120
    %v517 = vpop.permute.xlu0 %516
    %518 = vrot.lane.b32.xlu0 %v164, 88
    %v519 = vpop.permute.xlu0 %518
    %v520 = vsel %vm173, %v517, 0
    %v522 = vsel %vm173, %v519, 0
    %524 = vmatpush.xpose.msra.mxu0 0.0
    %525 = vmatpush.xpose.msra.mxu0 0.0
    %526 = vmatpush.xpose.msra.mxu0 0.0
    %527 = vmatpush.xpose.msra.mxu0 0.0
    %528 = vmatpush.xpose.msra.mxu0 0.0
    %529 = vmatpush.xpose.msra.mxu0 0.0
    %530 = vmatpush.xpose.msra.mxu0 0.0
    %531 = vmatpush.xpose.msra.mxu0 0.0
    %532 = vmatpush.xpose.msra.mxu0 0.0
    %533 = vmatpush.xpose.msra.mxu0 0.0
    %534 = vmatpush.xpose.msra.mxu0 0.0
    %535 = vmatpush.xpose.msra.mxu0 0.0
    %536 = vmatpush.xpose.msra.mxu0 0.0
    %537 = vmatpush.xpose.msra.mxu0 0.0
    %538 = vmatpush.xpose.msra.mxu0 0.0
    %539 = vmatpush.xpose.msra.mxu0 %v522
    %540 = vmatmul.f32.gmra.mxu0 %v520
    %v541 = vpop.f32.mrf.mxu0
    %v542 = vadd.f32 %v450, %v541
    %543 = vdwg.mxu0
    %v544 = vsel %vm173, %v542, -inf
    %545 = vmax.xlane.f32.xlu0 %v544
    %v546 = vpop.xlane.xlu0 %545
    %v547 = vsub.f32 %v542, %v546
    %v548 = vmul.f32 %v547, 1.442695
    %v549 = vpow.pop %v548
    %v550 = vsel %vm173, %v549, 0.0
    %551 = vadd.xlane.f32.xlu0 %v550
    %v552 = vpop.xlane.xlu0 %551
    %v553 = vrcp.pop %v552
    %v554 = vmul.f32 %v549, %v553
    %555 = vrot.lane.b32.xlu0 %v164, 56
    %v556 = vpop.permute.xlu0 %555
    %v559 = vsel %vm173, %v554, 0
    %561 = vmatpush.msra.mxu0 0.0
    %562 = vmatpush.msra.mxu0 0.0
    %563 = vmatpush.msra.mxu0 0.0
    %564 = vmatpush.msra.mxu0 0.0
    %565 = vmatpush.msra.mxu0 0.0
    %566 = vmatpush.msra.mxu0 0.0
    %567 = vmatpush.msra.mxu0 0.0
    %568 = vmatpush.msra.mxu0 0.0
    %569 = vmatpush.msra.mxu0 0.0
    %570 = vmatpush.msra.mxu0 0.0
    %571 = vmatpush.msra.mxu0 0.0
    %572 = vmatpush.msra.mxu0 0.0
    %573 = vmatpush.msra.mxu0 0.0
    %574 = vmatpush.msra.mxu0 0.0
    %575 = vmatpush.msra.mxu0 0.0
    %576 = vmatpush.msra.mxu0 %v556
    %577 = vmatmul.f32.gmra.mxu0 %v559
    %v578 = vpop.f32.mrf.mxu0
    %v579 = vadd.f32 0.0, %v578
    %580 = vdwg.mxu0
    %581 = vrot.lane.b32.xlu0 %v164, 112
    %v582 = vpop.permute.xlu0 %581
    %583 = vrot.lane.b32.xlu0 %v164, 80
    %v584 = vpop.permute.xlu0 %583
    %v585 = vsel %vm173, %v582, 0
    %v587 = vsel %vm173, %v584, 0
    %589 = vmatpush.xpose.msra.mxu0 0.0
    %590 = vmatpush.xpose.msra.mxu0 0.0
    %591 = vmatpush.xpose.msra.mxu0 0.0
    %592 = vmatpush.xpose.msra.mxu0 0.0
    %593 = vmatpush.xpose.msra.mxu0 0.0
    %594 = vmatpush.xpose.msra.mxu0 0.0
    %595 = vmatpush.xpose.msra.mxu0 0.0
    %596 = vmatpush.xpose.msra.mxu0 0.0
    %597 = vmatpush.xpose.msra.mxu0 0.0
    %598 = vmatpush.xpose.msra.mxu0 0.0
    %599 = vmatpush.xpose.msra.mxu0 0.0
    %600 = vmatpush.xpose.msra.mxu0 0.0
    %601 = vmatpush.xpose.msra.mxu0 0.0
    %602 = vmatpush.xpose.msra.mxu0 0.0
    %603 = vmatpush.xpose.msra.mxu0 0.0
    %604 = vmatpush.xpose.msra.mxu0 %v587
    %605 = vmatmul.f32.gmra.mxu0 %v585
    %v606 = vpop.f32.mrf.mxu0
    %v607 = vadd.f32 %v450, %v606
    %608 = vdwg.mxu0
    %v609 = vsel %vm173, %v607, -inf
    %610 = vmax.xlane.f32.xlu0 %v609
    %v611 = vpop.xlane.xlu0 %610
    %v612 = vsub.f32 %v607, %v611
    %v613 = vmul.f32 %v612, 1.442695
    %v614 = vpow.pop %v613
    %v615 = vsel %vm173, %v614, 0.0
    %616 = vadd.xlane.f32.xlu0 %v615
    %v617 = vpop.xlane.xlu0 %616
    %v618 = vrcp.pop %v617
    %v619 = vmul.f32 %v614, %v618
    %620 = vrot.lane.b32.xlu0 %v164, 48
    %v621 = vpop.permute.xlu0 %620
    %v624 = vsel %vm173, %v619, 0
    %626 = vmatpush.msra.mxu0 0.0
    %627 = vmatpush.msra.mxu0 0.0
    %628 = vmatpush.msra.mxu0 0.0
    %629 = vmatpush.msra.mxu0 0.0
    %630 = vmatpush.msra.mxu0 0.0
    %631 = vmatpush.msra.mxu0 0.0
    %632 = vmatpush.msra.mxu0 0.0
    %633 = vmatpush.msra.mxu0 0.0
    %634 = vmatpush.msra.mxu0 0.0
    %635 = vmatpush.msra.mxu0 0.0
    %636 = vmatpush.msra.mxu0 0.0
    %637 = vmatpush.msra.mxu0 0.0
    %638 = vmatpush.msra.mxu0 0.0
    %639 = vmatpush.msra.mxu0 0.0
    %640 = vmatpush.msra.mxu0 0.0
    %641 = vmatpush.msra.mxu0 %v621
    %642 = vmatmul.f32.gmra.mxu0 %v624
    %v643 = vpop.f32.mrf.mxu0
    %v644 = vadd.f32 0.0, %v643
    %645 = vdwg.mxu0
    %646 = vrot.lane.b32.xlu0 %v164, 104
    %v647 = vpop.permute.xlu0 %646
    %648 = vrot.lane.b32.xlu0 %v164, 72
    %v649 = vpop.permute.xlu0 %648
    %v650 = vsel %vm173, %v647, 0
    %v652 = vsel %vm173, %v649, 0
    %654 = vmatpush.xpose.msra.mxu0 0.0
    %655 = vmatpush.xpose.msra.mxu0 0.0
    %656 = vmatpush.xpose.msra.mxu0 0.0
    %657 = vmatpush.xpose.msra.mxu0 0.0
    %658 = vmatpush.xpose.msra.mxu0 0.0
    %659 = vmatpush.xpose.msra.mxu0 0.0
    %660 = vmatpush.xpose.msra.mxu0 0.0
    %661 = vmatpush.xpose.msra.mxu0 0.0
    %662 = vmatpush.xpose.msra.mxu0 0.0
    %663 = vmatpush.xpose.msra.mxu0 0.0
    %664 = vmatpush.xpose.msra.mxu0 0.0
    %665 = vmatpush.xpose.msra.mxu0 0.0
    %666 = vmatpush.xpose.msra.mxu0 0.0
    %667 = vmatpush.xpose.msra.mxu0 0.0
    %668 = vmatpush.xpose.msra.mxu0 0.0
    %669 = vmatpush.xpose.msra.mxu0 %v652
    %670 = vmatmul.f32.gmra.mxu0 %v650
    %v671 = vpop.f32.mrf.mxu0
    %v672 = vadd.f32 %v450, %v671
    %673 = vdwg.mxu0
    %v674 = vsel %vm173, %v672, -inf
    %675 = vmax.xlane.f32.xlu0 %v674
    %v676 = vpop.xlane.xlu0 %675
    %v677 = vsub.f32 %v672, %v676
    %v678 = vmul.f32 %v677, 1.442695
    %v679 = vpow.pop %v678
    %v680 = vsel %vm173, %v679, 0.0
    %681 = vadd.xlane.f32.xlu0 %v680
    %v682 = vpop.xlane.xlu0 %681
    %v683 = vrcp.pop %v682
    %v684 = vmul.f32 %v679, %v683
    %685 = vrot.lane.b32.xlu0 %v164, 40
    %v686 = vpop.permute.xlu0 %685
    %v689 = vsel %vm173, %v684, 0
    %691 = vmatpush.msra.mxu0 0.0
    %692 = vmatpush.msra.mxu0 0.0
    %693 = vmatpush.msra.mxu0 0.0
    %694 = vmatpush.msra.mxu0 0.0
    %695 = vmatpush.msra.mxu0 0.0
    %696 = vmatpush.msra.mxu0 0.0
    %697 = vmatpush.msra.mxu0 0.0
    %698 = vmatpush.msra.mxu0 0.0
    %699 = vmatpush.msra.mxu0 0.0
    %700 = vmatpush.msra.mxu0 0.0
    %701 = vmatpush.msra.mxu0 0.0
    %702 = vmatpush.msra.mxu0 0.0
    %703 = vmatpush.msra.mxu0 0.0
    %704 = vmatpush.msra.mxu0 0.0
    %705 = vmatpush.msra.mxu0 0.0
    %706 = vmatpush.msra.mxu0 %v686
    %707 = vmatmul.f32.gmra.mxu0 %v689
    %v708 = vpop.f32.mrf.mxu0
    %v709 = vadd.f32 0.0, %v708
    %710 = vdwg.mxu0
    %712 = vrot.lane.b32.xlu0 %v579, 8
    %v713 = vpop.permute.xlu0 %712
    %716 = vrot.lane.b32.xlu0 %v644, 16
    %v717 = vpop.permute.xlu0 %716
    %720 = vrot.lane.b32.xlu0 %v709, 24
    %v721 = vpop.permute.xlu0 %720
    %v723 = vsel %vm173, %v514, %v713
    %v724 = vsel %vm443, %v723, %v717
    %v725 = vsel %vm445, %v724, %v721
    %v726 = vld [vmem:[%s6] sm:$0xff]
    %v727 = vld [vmem:[%s6 + $0x8] sm:$0xff]
    %v728 = vld [vmem:[%s6 + $0x10] sm:$0xff]
    %v729 = vld [vmem:[%s6 + $0x18] sm:$0xff]
    %v730 = vld [vmem:[%s7] sm:$0x1]
    %v732 = vperm.slane %v730, 0
    %v735 = vsel %vm67, %v446, 0
    %v738 = vsel %vm67, %v725, 0
    %740 = vmatpush.msra.mxu0 0.0
    %741 = vmatpush.msra.mxu0 0.0
    %742 = vmatpush.msra.mxu0 0.0
    %743 = vmatpush.msra.mxu0 0.0
    %744 = vmatpush.msra.mxu0 0.0
    %745 = vmatpush.msra.mxu0 0.0
    %746 = vmatpush.msra.mxu0 0.0
    %747 = vmatpush.msra.mxu0 0.0
    %748 = vmatpush.msra.mxu0 0.0
    %749 = vmatpush.msra.mxu0 0.0
    %750 = vmatpush.msra.mxu0 0.0
    %751 = vmatpush.msra.mxu0 0.0
    %752 = vmatpush.msra.mxu0 %v729
    %753 = vmatpush.msra.mxu0 %v728
    %754 = vmatpush.msra.mxu0 %v727
    %755 = vmatpush.msra.mxu0 %v726
    %756 = vmatmul.f32.gmra.mxu0 %v735
    %v757 = vpop.f32.mrf.mxu0
    %v758 = vadd.f32 %v732, %v757
    %759 = vmatmul.f32.gmra.mxu0 %v738
    %v760 = vpop.f32.mrf.mxu0
    %v761 = vadd.f32 %v732, %v760
    %762 = vdwg.mxu0
    %v763 = vadd.f32 %v758, %v127
    %v764 = vadd.f32 %v761, %v128
    %v765 = vld [vmem:[%s8] sm:$0x1]
    %v766 = vld [vmem:[%s9] sm:$0x1]
    %v767 = vsel %vm67, %v763, 0.0
    %768 = vadd.xlane.f32.xlu0 %v767
    %v769 = vpop.xlane.xlu0 %768
    %v770 = vsel %vm67, %v764, 0.0
    %771 = vadd.xlane.f32.xlu0 %v770
    %v772 = vpop.xlane.xlu0 %771
    %v773 = vmul.f32 %v769, %v80
    %v774 = vmul.f32 %v772, %v80
    %v775 = vsub.f32 %v763, %v773
    %v776 = vsub.f32 %v764, %v774
    %v777 = vmul.f32 %v775, %v775
    %v778 = vmul.f32 %v776, %v776
    %v779 = vsel %vm67, %v777, 0.0
    %780 = vadd.xlane.f32.xlu0 %v779
    %v781 = vpop.xlane.xlu0 %780
    %v782 = vsel %vm67, %v778, 0.0
    %783 = vadd.xlane.f32.xlu0 %v782
    %v784 = vpop.xlane.xlu0 %783
    %v785 = vmul.f32 %v781, %v80
    %v786 = vmul.f32 %v784, %v80
    %v787 = vadd.f32 %v785, 1e-12
    %v788 = vadd.f32 %v786, 1e-12
    %v789 = vrsqrt.pop %v787
    %v790 = vmul.f32 %v789, %v787
    %v791 = vmul.f32 %v790, %v789
    %v792 = vmul.f32 0.5, %v791
    %v793 = vsub.f32 1.5, %v792
    %v794 = vmul.f32 %v789, %v793
    %vm795 = vweird.f32 %v787
    %vm796 = vweird.f32 %v789
    %vm797 = vmor %vm795, %vm796
    %v798 = vsel %vm797, %v789, %v794
    %v799 = vrsqrt.pop %v788
    %v800 = vmul.f32 %v799, %v788
    %v801 = vmul.f32 %v800, %v799
    %v802 = vmul.f32 0.5, %v801
    %v803 = vsub.f32 1.5, %v802
    %v804 = vmul.f32 %v799, %v803
    %vm805 = vweird.f32 %v788
    %vm806 = vweird.f32 %v799
    %vm807 = vmor %vm805, %vm806
    %v808 = vsel %vm807, %v799, %v804
    %v809 = vmul.f32 %v775, %v798
    %v810 = vmul.f32 %v776, %v808
    %v812 = vperm.slane %v765, 0
    %v814 = vmul.f32 %v809, %v812
    %v815 = vmul.f32 %v810, %v812
    %v817 = vperm.slane %v766, 0
    %v819 = vadd.f32 %v814, %v817
    %v820 = vadd.f32 %v815, %v817
    %v821 = vld [vmem:[%s10] sm:$0xff]
    %v822 = vld [vmem:[%s10 + $0x8] sm:$0xff]
    %v823 = vld [vmem:[%s10 + $0x10] sm:$0xff]
    %v824 = vld [vmem:[%s10 + $0x18] sm:$0xff]
    %v825 = vld [vmem:[%s11] sm:$0x1]
    %v827 = vperm.slane %v825, 0
    %v830 = vsel %vm67, %v819, 0
    %v833 = vsel %vm67, %v820, 0
    %835 = vmatpush.msra.mxu0 0.0
    %836 = vmatpush.msra.mxu0 0.0
    %837 = vmatpush.msra.mxu0 0.0
    %838 = vmatpush.msra.mxu0 0.0
    %839 = vmatpush.msra.mxu0 0.0
    %840 = vmatpush.msra.mxu0 0.0
    %841 = vmatpush.msra.mxu0 0.0
    %842 = vmatpush.msra.mxu0 0.0
    %843 = vmatpush.msra.mxu0 0.0
    %844 = vmatpush.msra.mxu0 0.0
    %845 = vmatpush.msra.mxu0 0.0
    %846 = vmatpush.msra.mxu0 0.0
    %847 = vmatpush.msra.mxu0 %v824
    %848 = vmatpush.msra.mxu0 %v823
    %849 = vmatpush.msra.mxu0 %v822
    %850 = vmatpush.msra.mxu0 %v821
    %851 = vmatmul.f32.gmra.mxu0 %v830
    %v852 = vpop.f32.mrf.mxu0
    %v853 = vadd.f32 %v827, %v852
    %854 = vmatmul.f32.gmra.mxu0 %v833
    %v855 = vpop.f32.mrf.mxu0
    %v856 = vadd.f32 %v827, %v855
    %857 = vdwg.mxu0
    %v858 = vmul.f32 %v853, 0.5
    %v859 = vmul.f32 %v856, 0.5
    %v860 = vmul.f32 %v853, 0.044715
    %v861 = vmul.f32 %v856, 0.044715
    %v862 = vmul.f32 %v860, %v853
    %v863 = vmul.f32 %v861, %v856
    %v864 = vmul.f32 %v862, %v853
    %v865 = vmul.f32 %v863, %v856
    %v866 = vadd.f32 %v853, %v864
    %v867 = vadd.f32 %v856, %v865
    %v868 = vmul.f32 %v866, 0.7978846
    %v869 = vmul.f32 %v867, 0.7978846
    %v870 = vtanh.pop %v868
    %v871 = vtanh.pop %v869
    %v872 = vadd.f32 %v870, 1.0
    %v873 = vadd.f32 %v871, 1.0
    %v874 = vmul.f32 %v858, %v872
    %v875 = vmul.f32 %v859, %v873
    %v876 = vld [vmem:[%s12] sm:$0xff]
    %v877 = vld [vmem:[%s12 + $0x8] sm:$0xff]
    %v878 = vld [vmem:[%s12 + $0x10] sm:$0xff]
    %v879 = vld [vmem:[%s12 + $0x18] sm:$0xff]
    %v880 = vld [vmem:[%s12 + $0x20] sm:$0xff]
    %v881 = vld [vmem:[%s12 + $0x28] sm:$0xff]
    %v882 = vld [vmem:[%s12 + $0x30] sm:$0xff]
    %v883 = vld [vmem:[%s12 + $0x38] sm:$0xff]
    %v884 = vld [vmem:[%s13] sm:$0x1]
    %v886 = vperm.slane %v884, 0
    %vm888 = vcmask 523264
    %v890 = vsel %vm888, %v874, 0
    %v893 = vsel %vm888, %v875, 0
    %895 = vmatpush.msra.mxu0 0.0
    %896 = vmatpush.msra.mxu0 0.0
    %897 = vmatpush.msra.mxu0 0.0
    %898 = vmatpush.msra.mxu0 0.0
    %899 = vmatpush.msra.mxu0 0.0
    %900 = vmatpush.msra.mxu0 0.0
    %901 = vmatpush.msra.mxu0 0.0
    %902 = vmatpush.msra.mxu0 0.0
    %903 = vmatpush.msra.mxu0 %v883
    %904 = vmatpush.msra.mxu0 %v882
    %905 = vmatpush.msra.mxu0 %v881
    %906 = vmatpush.msra.mxu0 %v880
    %907 = vmatpush.msra.mxu0 %v879
    %908 = vmatpush.msra.mxu0 %v878
    %909 = vmatpush.msra.mxu0 %v877
    %910 = vmatpush.msra.mxu0 %v876
    %911 = vmatmul.f32.gmra.mxu0 %v890
    %v912 = vpop.f32.mrf.mxu0
    %v913 = vadd.f32 %v886, %v912
    %914 = vmatmul.f32.gmra.mxu0 %v893
    %v915 = vpop.f32.mrf.mxu0
    %v916 = vadd.f32 %v886, %v915
    %917 = vdwg.mxu0
    %v918 = vadd.f32 %v913, %v819
    %v919 = vadd.f32 %v916, %v820
    %v920 = vld [vmem:[%s14] sm:$0x1]
    %v921 = vld [vmem:[%s15] sm:$0x1]
    %v922 = vsel %vm67, %v918, 0.0
    %923 = vadd.xlane.f32.xlu0 %v922
    %v924 = vpop.xlane.xlu0 %923
    %v925 = vsel %vm67, %v919, 0.0
    %926 = vadd.xlane.f32.xlu0 %v925
    %v927 = vpop.xlane.xlu0 %926
    %v928 = vmul.f32 %v924, %v80
    %v929 = vmul.f32 %v927, %v80
    %v930 = vsub.f32 %v918, %v928
    %v931 = vsub.f32 %v919, %v929
    %v932 = vmul.f32 %v930, %v930
    %v933 = vmul.f32 %v931, %v931
    %v934 = vsel %vm67, %v932, 0.0
    %935 = vadd.xlane.f32.xlu0 %v934
    %v936 = vpop.xlane.xlu0 %935
    %v937 = vsel %vm67, %v933, 0.0
    %938 = vadd.xlane.f32.xlu0 %v937
    %v939 = vpop.xlane.xlu0 %938
    %v940 = vmul.f32 %v936, %v80
    %v941 = vmul.f32 %v939, %v80
    %v942 = vadd.f32 %v940, 1e-12
    %v943 = vadd.f32 %v941, 1e-12
    %v944 = vrsqrt.pop %v942
    %v945 = vmul.f32 %v944, %v942
    %v946 = vmul.f32 %v945, %v944
    %v947 = vmul.f32 0.5, %v946
    %v948 = vsub.f32 1.5, %v947
    %v949 = vmul.f32 %v944, %v948
    %vm950 = vweird.f32 %v942
    %vm951 = vweird.f32 %v944
    %vm952 = vmor %vm950, %vm951
    %v953 = vsel %vm952, %v944, %v949
    %v954 = vrsqrt.pop %v943
    %v955 = vmul.f32 %v954, %v943
    %v956 = vmul.f32 %v955, %v954
    %v957 = vmul.f32 0.5, %v956
    %v958 = vsub.f32 1.5, %v957
    %v959 = vmul.f32 %v954, %v958
    %vm960 = vweird.f32 %v943
    %vm961 = vweird.f32 %v954
    %vm962 = vmor %vm960, %vm961
    %v963 = vsel %vm962, %v954, %v959
    %v964 = vmul.f32 %v930, %v953
    %v965 = vmul.f32 %v931, %v963
    %v967 = vperm.slane %v920, 0
    %v969 = vmul.f32 %v964, %v967
    %v970 = vmul.f32 %v965, %v967
    %v972 = vperm.slane %v921, 0
    %v974 = vadd.f32 %v969, %v972
    %v975 = vadd.f32 %v970, %v972
    %s976 = scalar_lea.vmem %s4, 32
    %v977 = vld [vmem:[%s976] sm:$0xff]
    %v978 = vld [vmem:[%s976 + $0x8] sm:$0xff]
    %v979 = vld [vmem:[%s976 + $0x10] sm:$0xff]
    %v980 = vld [vmem:[%s976 + $0x18] sm:$0xff]
    %s981 = scalar_lea.vmem %s5, 1
    %v982 = vld [vmem:[%s981] sm:$0x1]
    %v984 = vperm.slane %v982, 0
    %v987 = vsel %vm67, %v974, 0
    %v990 = vsel %vm67, %v975, 0
    %992 = vmatpush.msra.mxu0 0.0
    %993 = vmatpush.msra.mxu0 0.0
    %994 = vmatpush.msra.mxu0 0.0
    %995 = vmatpush.msra.mxu0 0.0
    %996 = vmatpush.msra.mxu0 0.0
    %997 = vmatpush.msra.mxu0 0.0
    %998 = vmatpush.msra.mxu0 0.0
    %999 = vmatpush.msra.mxu0 0.0
    %1000 = vmatpush.msra.mxu0 0.0
    %1001 = vmatpush.msra.mxu0 0.0
    %1002 = vmatpush.msra.mxu0 0.0
    %1003 = vmatpush.msra.mxu0 0.0
    %1004 = vmatpush.msra.mxu0 %v980
    %1005 = vmatpush.msra.mxu0 %v979
    %1006 = vmatpush.msra.mxu0 %v978
    %1007 = vmatpush.msra.mxu0 %v977
    %1008 = vmatmul.f32.gmra.mxu0 %v987
    %v1009 = vpop.f32.mrf.mxu0
    %v1010 = vadd.f32 %v984, %v1009
    %1011 = vmatmul.f32.gmra.mxu0 %v990
    %v1012 = vpop.f32.mrf.mxu0
    %v1013 = vadd.f32 %v984, %v1012
    %1014 = vdwg.mxu0
    %1016 = vrot.lane.b32.xlu0 %v1010, 96
    %v1017 = vpop.permute.xlu0 %1016
    %v1018 = vsel %vm173, %v1010, 0
    %v1020 = vsel %vm173, %v1017, 0
    %1022 = vmatpush.xpose.msra.mxu0 0.0
    %1023 = vmatpush.xpose.msra.mxu0 0.0
    %1024 = vmatpush.xpose.msra.mxu0 0.0
    %1025 = vmatpush.xpose.msra.mxu0 0.0
    %1026 = vmatpush.xpose.msra.mxu0 0.0
    %1027 = vmatpush.xpose.msra.mxu0 0.0
    %1028 = vmatpush.xpose.msra.mxu0 0.0
    %1029 = vmatpush.xpose.msra.mxu0 0.0
    %1030 = vmatpush.xpose.msra.mxu0 0.0
    %1031 = vmatpush.xpose.msra.mxu0 0.0
    %1032 = vmatpush.xpose.msra.mxu0 0.0
    %1033 = vmatpush.xpose.msra.mxu0 0.0
    %1034 = vmatpush.xpose.msra.mxu0 0.0
    %1035 = vmatpush.xpose.msra.mxu0 0.0
    %1036 = vmatpush.xpose.msra.mxu0 0.0
    %1037 = vmatpush.xpose.msra.mxu0 %v1020
    %1038 = vmatmul.f32.gmra.mxu0 %v1018
    %v1039 = vpop.f32.mrf.mxu0
    %v1040 = vadd.f32 %v168, %v1039
    %1041 = vdwg.mxu0
    %v1042 = vsel %vm173, %v1040, -inf
    %1043 = vmax.xlane.f32.xlu0 %v1042
    %v1044 = vpop.xlane.xlu0 %1043
    %v1045 = vsub.f32 %v1040, %v1044
    %v1046 = vmul.f32 %v1045, 1.442695
    %v1047 = vpow.pop %v1046
    %v1048 = vsel %vm173, %v1047, 0.0
    %1049 = vadd.xlane.f32.xlu0 %v1048
    %v1050 = vpop.xlane.xlu0 %1049
    %v1051 = vrcp.pop %v1050
    %v1052 = vmul.f32 %v1047, %v1051
    %1053 = vrot.lane.b32.xlu0 %v1010, 64
    %v1054 = vpop.permute.xlu0 %1053
    %v1057 = vsel %vm173, %v1052, 0
    %1059 = vmatpush.msra.mxu0 0.0
    %1060 = vmatpush.msra.mxu0 0.0
    %1061 = vmatpush.msra.mxu0 0.0
    %1062 = vmatpush.msra.mxu0 0.0
    %1063 = vmatpush.msra.mxu0 0.0
    %1064 = vmatpush.msra.mxu0 0.0
    %1065 = vmatpush.msra.mxu0 0.0
    %1066 = vmatpush.msra.mxu0 0.0
    %1067 = vmatpush.msra.mxu0 0.0
    %1068 = vmatpush.msra.mxu0 0.0
    %1069 = vmatpush.msra.mxu0 0.0
    %1070 = vmatpush.msra.mxu0 0.0
    %1071 = vmatpush.msra.mxu0 0.0
    %1072 = vmatpush.msra.mxu0 0.0
    %1073 = vmatpush.msra.mxu0 0.0
    %1074 = vmatpush.msra.mxu0 %v1054
    %1075 = vmatmul.f32.gmra.mxu0 %v1057
    %v1076 = vpop.f32.mrf.mxu0
    %v1077 = vadd.f32 0.0, %v1076
    %1078 = vdwg.mxu0
    %1079 = vrot.lane.b32.xlu0 %v1010, 120
    %v1080 = vpop.permute.xlu0 %1079
    %1081 = vrot.lane.b32.xlu0 %v1010, 88
    %v1082 = vpop.permute.xlu0 %1081
    %v1083 = vsel %vm173, %v1080, 0
    %v1085 = vsel %vm173, %v1082, 0
    %1087 = vmatpush.xpose.msra.mxu0 0.0
    %1088 = vmatpush.xpose.msra.mxu0 0.0
    %1089 = vmatpush.xpose.msra.mxu0 0.0
    %1090 = vmatpush.xpose.msra.mxu0 0.0
    %1091 = vmatpush.xpose.msra.mxu0 0.0
    %1092 = vmatpush.xpose.msra.mxu0 0.0
    %1093 = vmatpush.xpose.msra.mxu0 0.0
    %1094 = vmatpush.xpose.msra.mxu0 0.0
    %1095 = vmatpush.xpose.msra.mxu0 0.0
    %1096 = vmatpush.xpose.msra.mxu0 0.0
    %1097 = vmatpush.xpose.msra.mxu0 0.0
    %1098 = vmatpush.xpose.msra.mxu0 0.0
    %1099 = vmatpush.xpose.msra.mxu0 0.0
    %1100 = vmatpush.xpose.msra.mxu0 0.0
    %1101 = vmatpush.xpose.msra.mxu0 0.0
    %1102 = vmatpush.xpose.msra.mxu0 %v1085
    %1103 = vmatmul.f32.gmra.mxu0 %v1083
    %v1104 = vpop.f32.mrf.mxu0
    %v1105 = vadd.f32 %v168, %v1104
    %1106 = vdwg.mxu0
    %v1107 = vsel %vm173, %v1105, -inf
    %1108 = vmax.xlane.f32.xlu0 %v1107
    %v1109 = vpop.xlane.xlu0 %1108
    %v1110 = vsub.f32 %v1105, %v1109
    %v1111 = vmul.f32 %v1110, 1.442695
    %v1112 = vpow.pop %v1111
    %v1113 = vsel %vm173, %v1112, 0.0
    %1114 = vadd.xlane.f32.xlu0 %v1113
    %v1115 = vpop.xlane.xlu0 %1114
    %v1116 = vrcp.pop %v1115
    %v1117 = vmul.f32 %v1112, %v1116
    %1118 = vrot.lane.b32.xlu0 %v1010, 56
    %v1119 = vpop.permute.xlu0 %1118
    %v1122 = vsel %vm173, %v1117, 0
    %1124 = vmatpush.msra.mxu0 0.0
    %1125 = vmatpush.msra.mxu0 0.0
    %1126 = vmatpush.msra.mxu0 0.0
    %1127 = vmatpush.msra.mxu0 0.0
    %1128 = vmatpush.msra.mxu0 0.0
    %1129 = vmatpush.msra.mxu0 0.0
    %1130 = vmatpush.msra.mxu0 0.0
    %1131 = vmatpush.msra.mxu0 0.0
    %1132 = vmatpush.msra.mxu0 0.0
    %1133 = vmatpush.msra.mxu0 0.0
    %1134 = vmatpush.msra.mxu0 0.0
    %1135 = vmatpush.msra.mxu0 0.0
    %1136 = vmatpush.msra.mxu0 0.0
    %1137 = vmatpush.msra.mxu0 0.0
    %1138 = vmatpush.msra.mxu0 0.0
    %1139 = vmatpush.msra.mxu0 %v1119
    %1140 = vmatmul.f32.gmra.mxu0 %v1122
    %v1141 = vpop.f32.mrf.mxu0
    %v1142 = vadd.f32 0.0, %v1141
    %1143 = vdwg.mxu0
    %1144 = vrot.lane.b32.xlu0 %v1010, 112
    %v1145 = vpop.permute.xlu0 %1144
    %1146 = vrot.lane.b32.xlu0 %v1010, 80
    %v1147 = vpop.permute.xlu0 %1146
    %v1148 = vsel %vm173, %v1145, 0
    %v1150 = vsel %vm173, %v1147, 0
    %1152 = vmatpush.xpose.msra.mxu0 0.0
    %1153 = vmatpush.xpose.msra.mxu0 0.0
    %1154 = vmatpush.xpose.msra.mxu0 0.0
    %1155 = vmatpush.xpose.msra.mxu0 0.0
    %1156 = vmatpush.xpose.msra.mxu0 0.0
    %1157 = vmatpush.xpose.msra.mxu0 0.0
    %1158 = vmatpush.xpose.msra.mxu0 0.0
    %1159 = vmatpush.xpose.msra.mxu0 0.0
    %1160 = vmatpush.xpose.msra.mxu0 0.0
    %1161 = vmatpush.xpose.msra.mxu0 0.0
    %1162 = vmatpush.xpose.msra.mxu0 0.0
    %1163 = vmatpush.xpose.msra.mxu0 0.0
    %1164 = vmatpush.xpose.msra.mxu0 0.0
    %1165 = vmatpush.xpose.msra.mxu0 0.0
    %1166 = vmatpush.xpose.msra.mxu0 0.0
    %1167 = vmatpush.xpose.msra.mxu0 %v1150
    %1168 = vmatmul.f32.gmra.mxu0 %v1148
    %v1169 = vpop.f32.mrf.mxu0
    %v1170 = vadd.f32 %v168, %v1169
    %1171 = vdwg.mxu0
    %v1172 = vsel %vm173, %v1170, -inf
    %1173 = vmax.xlane.f32.xlu0 %v1172
    %v1174 = vpop.xlane.xlu0 %1173
    %v1175 = vsub.f32 %v1170, %v1174
    %v1176 = vmul.f32 %v1175, 1.442695
    %v1177 = vpow.pop %v1176
    %v1178 = vsel %vm173, %v1177, 0.0
    %1179 = vadd.xlane.f32.xlu0 %v1178
    %v1180 = vpop.xlane.xlu0 %1179
    %v1181 = vrcp.pop %v1180
    %v1182 = vmul.f32 %v1177, %v1181
    %1183 = vrot.lane.b32.xlu0 %v1010, 48
    %v1184 = vpop.permute.xlu0 %1183
    %v1187 = vsel %vm173, %v1182, 0
    %1189 = vmatpush.msra.mxu0 0.0
    %1190 = vmatpush.msra.mxu0 0.0
    %1191 = vmatpush.msra.mxu0 0.0
    %1192 = vmatpush.msra.mxu0 0.0
    %1193 = vmatpush.msra.mxu0 0.0
    %1194 = vmatpush.msra.mxu0 0.0
    %1195 = vmatpush.msra.mxu0 0.0
    %1196 = vmatpush.msra.mxu0 0.0
    %1197 = vmatpush.msra.mxu0 0.0
    %1198 = vmatpush.msra.mxu0 0.0
    %1199 = vmatpush.msra.mxu0 0.0
    %1200 = vmatpush.msra.mxu0 0.0
    %1201 = vmatpush.msra.mxu0 0.0
    %1202 = vmatpush.msra.mxu0 0.0
    %1203 = vmatpush.msra.mxu0 0.0
    %1204 = vmatpush.msra.mxu0 %v1184
    %1205 = vmatmul.f32.gmra.mxu0 %v1187
    %v1206 = vpop.f32.mrf.mxu0
    %v1207 = vadd.f32 0.0, %v1206
    %1208 = vdwg.mxu0
    %1209 = vrot.lane.b32.xlu0 %v1010, 104
    %v1210 = vpop.permute.xlu0 %1209
    %1211 = vrot.lane.b32.xlu0 %v1010, 72
    %v1212 = vpop.permute.xlu0 %1211
    %v1213 = vsel %vm173, %v1210, 0
    %v1215 = vsel %vm173, %v1212, 0
    %1217 = vmatpush.xpose.msra.mxu0 0.0
    %1218 = vmatpush.xpose.msra.mxu0 0.0
    %1219 = vmatpush.xpose.msra.mxu0 0.0
    %1220 = vmatpush.xpose.msra.mxu0 0.0
    %1221 = vmatpush.xpose.msra.mxu0 0.0
    %1222 = vmatpush.xpose.msra.mxu0 0.0
    %1223 = vmatpush.xpose.msra.mxu0 0.0
    %1224 = vmatpush.xpose.msra.mxu0 0.0
    %1225 = vmatpush.xpose.msra.mxu0 0.0
    %1226 = vmatpush.xpose.msra.mxu0 0.0
    %1227 = vmatpush.xpose.msra.mxu0 0.0
    %1228 = vmatpush.xpose.msra.mxu0 0.0
    %1229 = vmatpush.xpose.msra.mxu0 0.0
    %1230 = vmatpush.xpose.msra.mxu0 0.0
    %1231 = vmatpush.xpose.msra.mxu0 0.0
    %1232 = vmatpush.xpose.msra.mxu0 %v1215
    %1233 = vmatmul.f32.gmra.mxu0 %v1213
    %v1234 = vpop.f32.mrf.mxu0
    %v1235 = vadd.f32 %v168, %v1234
    %1236 = vdwg.mxu0
    %v1237 = vsel %vm173, %v1235, -inf
    %1238 = vmax.xlane.f32.xlu0 %v1237
    %v1239 = vpop.xlane.xlu0 %1238
    %v1240 = vsub.f32 %v1235, %v1239
    %v1241 = vmul.f32 %v1240, 1.442695
    %v1242 = vpow.pop %v1241
    %v1243 = vsel %vm173, %v1242, 0.0
    %1244 = vadd.xlane.f32.xlu0 %v1243
    %v1245 = vpop.xlane.xlu0 %1244
    %v1246 = vrcp.pop %v1245
    %v1247 = vmul.f32 %v1242, %v1246
    %1248 = vrot.lane.b32.xlu0 %v1010, 40
    %v1249 = vpop.permute.xlu0 %1248
    %v1252 = vsel %vm173, %v1247, 0
    %1254 = vmatpush.msra.mxu0 0.0
    %1255 = vmatpush.msra.mxu0 0.0
    %1256 = vmatpush.msra.mxu0 0.0
    %1257 = vmatpush.msra.mxu0 0.0
    %1258 = vmatpush.msra.mxu0 0.0
    %1259 = vmatpush.msra.mxu0 0.0
    %1260 = vmatpush.msra.mxu0 0.0
    %1261 = vmatpush.msra.mxu0 0.0
    %1262 = vmatpush.msra.mxu0 0.0
    %1263 = vmatpush.msra.mxu0 0.0
    %1264 = vmatpush.msra.mxu0 0.0
    %1265 = vmatpush.msra.mxu0 0.0
    %1266 = vmatpush.msra.mxu0 0.0
    %1267 = vmatpush.msra.mxu0 0.0
    %1268 = vmatpush.msra.mxu0 0.0
    %1269 = vmatpush.msra.mxu0 %v1249
    %1270 = vmatmul.f32.gmra.mxu0 %v1252
    %v1271 = vpop.f32.mrf.mxu0
    %v1272 = vadd.f32 0.0, %v1271
    %1273 = vdwg.mxu0
    %1275 = vrot.lane.b32.xlu0 %v1142, 8
    %v1276 = vpop.permute.xlu0 %1275
    %1279 = vrot.lane.b32.xlu0 %v1207, 16
    %v1280 = vpop.permute.xlu0 %1279
    %1283 = vrot.lane.b32.xlu0 %v1272, 24
    %v1284 = vpop.permute.xlu0 %1283
    %v1286 = vsel %vm173, %v1077, %v1276
    %v1287 = vsel %vm443, %v1286, %v1280
    %v1288 = vsel %vm445, %v1287, %v1284
    %1290 = vrot.lane.b32.xlu0 %v1013, 96
    %v1291 = vpop.permute.xlu0 %1290
    %v1292 = vsel %vm173, %v1013, 0
    %v1294 = vsel %vm173, %v1291, 0
    %1296 = vmatpush.xpose.msra.mxu0 0.0
    %1297 = vmatpush.xpose.msra.mxu0 0.0
    %1298 = vmatpush.xpose.msra.mxu0 0.0
    %1299 = vmatpush.xpose.msra.mxu0 0.0
    %1300 = vmatpush.xpose.msra.mxu0 0.0
    %1301 = vmatpush.xpose.msra.mxu0 0.0
    %1302 = vmatpush.xpose.msra.mxu0 0.0
    %1303 = vmatpush.xpose.msra.mxu0 0.0
    %1304 = vmatpush.xpose.msra.mxu0 0.0
    %1305 = vmatpush.xpose.msra.mxu0 0.0
    %1306 = vmatpush.xpose.msra.mxu0 0.0
    %1307 = vmatpush.xpose.msra.mxu0 0.0
    %1308 = vmatpush.xpose.msra.mxu0 0.0
    %1309 = vmatpush.xpose.msra.mxu0 0.0
    %1310 = vmatpush.xpose.msra.mxu0 0.0
    %1311 = vmatpush.xpose.msra.mxu0 %v1294
    %1312 = vmatmul.f32.gmra.mxu0 %v1292
    %v1313 = vpop.f32.mrf.mxu0
    %v1314 = vadd.f32 %v450, %v1313
    %1315 = vdwg.mxu0
    %v1316 = vsel %vm173, %v1314, -inf
    %1317 = vmax.xlane.f32.xlu0 %v1316
    %v1318 = vpop.xlane.xlu0 %1317
    %v1319 = vsub.f32 %v1314, %v1318
    %v1320 = vmul.f32 %v1319, 1.442695
    %v1321 = vpow.pop %v1320
    %v1322 = vsel %vm173, %v1321, 0.0
    %1323 = vadd.xlane.f32.xlu0 %v1322
    %v1324 = vpop.xlane.xlu0 %1323
    %v1325 = vrcp.pop %v1324
    %v1326 = vmul.f32 %v1321, %v1325
    %1327 = vrot.lane.b32.xlu0 %v1013, 64
    %v1328 = vpop.permute.xlu0 %1327
    %v1331 = vsel %vm173, %v1326, 0
    %1333 = vmatpush.msra.mxu0 0.0
    %1334 = vmatpush.msra.mxu0 0.0
    %1335 = vmatpush.msra.mxu0 0.0
    %1336 = vmatpush.msra.mxu0 0.0
    %1337 = vmatpush.msra.mxu0 0.0
    %1338 = vmatpush.msra.mxu0 0.0
    %1339 = vmatpush.msra.mxu0 0.0
    %1340 = vmatpush.msra.mxu0 0.0
    %1341 = vmatpush.msra.mxu0 0.0
    %1342 = vmatpush.msra.mxu0 0.0
    %1343 = vmatpush.msra.mxu0 0.0
    %1344 = vmatpush.msra.mxu0 0.0
    %1345 = vmatpush.msra.mxu0 0.0
    %1346 = vmatpush.msra.mxu0 0.0
    %1347 = vmatpush.msra.mxu0 0.0
    %1348 = vmatpush.msra.mxu0 %v1328
    %1349 = vmatmul.f32.gmra.mxu0 %v1331
    %v1350 = vpop.f32.mrf.mxu0
    %v1351 = vadd.f32 0.0, %v1350
    %1352 = vdwg.mxu0
    %1353 = vrot.lane.b32.xlu0 %v1013, 120
    %v1354 = vpop.permute.xlu0 %1353
    %1355 = vrot.lane.b32.xlu0 %v1013, 88
    %v1356 = vpop.permute.xlu0 %1355
    %v1357 = vsel %vm173, %v1354, 0
    %v1359 = vsel %vm173, %v1356, 0
    %1361 = vmatpush.xpose.msra.mxu0 0.0
    %1362 = vmatpush.xpose.msra.mxu0 0.0
    %1363 = vmatpush.xpose.msra.mxu0 0.0
    %1364 = vmatpush.xpose.msra.mxu0 0.0
    %1365 = vmatpush.xpose.msra.mxu0 0.0
    %1366 = vmatpush.xpose.msra.mxu0 0.0
    %1367 = vmatpush.xpose.msra.mxu0 0.0
    %1368 = vmatpush.xpose.msra.mxu0 0.0
    %1369 = vmatpush.xpose.msra.mxu0 0.0
    %1370 = vmatpush.xpose.msra.mxu0 0.0
    %1371 = vmatpush.xpose.msra.mxu0 0.0
    %1372 = vmatpush.xpose.msra.mxu0 0.0
    %1373 = vmatpush.xpose.msra.mxu0 0.0
    %1374 = vmatpush.xpose.msra.mxu0 0.0
    %1375 = vmatpush.xpose.msra.mxu0 0.0
    %1376 = vmatpush.xpose.msra.mxu0 %v1359
    %1377 = vmatmul.f32.gmra.mxu0 %v1357
    %v1378 = vpop.f32.mrf.mxu0
    %v1379 = vadd.f32 %v450, %v1378
    %1380 = vdwg.mxu0
    %v1381 = vsel %vm173, %v1379, -inf
    %1382 = vmax.xlane.f32.xlu0 %v1381
    %v1383 = vpop.xlane.xlu0 %1382
    %v1384 = vsub.f32 %v1379, %v1383
    %v1385 = vmul.f32 %v1384, 1.442695
    %v1386 = vpow.pop %v1385
    %v1387 = vsel %vm173, %v1386, 0.0
    %1388 = vadd.xlane.f32.xlu0 %v1387
    %v1389 = vpop.xlane.xlu0 %1388
    %v1390 = vrcp.pop %v1389
    %v1391 = vmul.f32 %v1386, %v1390
    %1392 = vrot.lane.b32.xlu0 %v1013, 56
    %v1393 = vpop.permute.xlu0 %1392
    %v1396 = vsel %vm173, %v1391, 0
    %1398 = vmatpush.msra.mxu0 0.0
    %1399 = vmatpush.msra.mxu0 0.0
    %1400 = vmatpush.msra.mxu0 0.0
    %1401 = vmatpush.msra.mxu0 0.0
    %1402 = vmatpush.msra.mxu0 0.0
    %1403 = vmatpush.msra.mxu0 0.0
    %1404 = vmatpush.msra.mxu0 0.0
    %1405 = vmatpush.msra.mxu0 0.0
    %1406 = vmatpush.msra.mxu0 0.0
    %1407 = vmatpush.msra.mxu0 0.0
    %1408 = vmatpush.msra.mxu0 0.0
    %1409 = vmatpush.msra.mxu0 0.0
    %1410 = vmatpush.msra.mxu0 0.0
    %1411 = vmatpush.msra.mxu0 0.0
    %1412 = vmatpush.msra.mxu0 0.0
    %1413 = vmatpush.msra.mxu0 %v1393
    %1414 = vmatmul.f32.gmra.mxu0 %v1396
    %v1415 = vpop.f32.mrf.mxu0
    %v1416 = vadd.f32 0.0, %v1415
    %1417 = vdwg.mxu0
    %1418 = vrot.lane.b32.xlu0 %v1013, 112
    %v1419 = vpop.permute.xlu0 %1418
    %1420 = vrot.lane.b32.xlu0 %v1013, 80
    %v1421 = vpop.permute.xlu0 %1420
    %v1422 = vsel %vm173, %v1419, 0
    %v1424 = vsel %vm173, %v1421, 0
    %1426 = vmatpush.xpose.msra.mxu0 0.0
    %1427 = vmatpush.xpose.msra.mxu0 0.0
    %1428 = vmatpush.xpose.msra.mxu0 0.0
    %1429 = vmatpush.xpose.msra.mxu0 0.0
    %1430 = vmatpush.xpose.msra.mxu0 0.0
    %1431 = vmatpush.xpose.msra.mxu0 0.0
    %1432 = vmatpush.xpose.msra.mxu0 0.0
    %1433 = vmatpush.xpose.msra.mxu0 0.0
    %1434 = vmatpush.xpose.msra.mxu0 0.0
    %1435 = vmatpush.xpose.msra.mxu0 0.0
    %1436 = vmatpush.xpose.msra.mxu0 0.0
    %1437 = vmatpush.xpose.msra.mxu0 0.0
    %1438 = vmatpush.xpose.msra.mxu0 0.0
    %1439 = vmatpush.xpose.msra.mxu0 0.0
    %1440 = vmatpush.xpose.msra.mxu0 0.0
    %1441 = vmatpush.xpose.msra.mxu0 %v1424
    %1442 = vmatmul.f32.gmra.mxu0 %v1422
    %v1443 = vpop.f32.mrf.mxu0
    %v1444 = vadd.f32 %v450, %v1443
    %1445 = vdwg.mxu0
    %v1446 = vsel %vm173, %v1444, -inf
    %1447 = vmax.xlane.f32.xlu0 %v1446
    %v1448 = vpop.xlane.xlu0 %1447
    %v1449 = vsub.f32 %v1444, %v1448
    %v1450 = vmul.f32 %v1449, 1.442695
    %v1451 = vpow.pop %v1450
    %v1452 = vsel %vm173, %v1451, 0.0
    %1453 = vadd.xlane.f32.xlu0 %v1452
    %v1454 = vpop.xlane.xlu0 %1453
    %v1455 = vrcp.pop %v1454
    %v1456 = vmul.f32 %v1451, %v1455
    %1457 = vrot.lane.b32.xlu0 %v1013, 48
    %v1458 = vpop.permute.xlu0 %1457
    %v1461 = vsel %vm173, %v1456, 0
    %1463 = vmatpush.msra.mxu0 0.0
    %1464 = vmatpush.msra.mxu0 0.0
    %1465 = vmatpush.msra.mxu0 0.0
    %1466 = vmatpush.msra.mxu0 0.0
    %1467 = vmatpush.msra.mxu0 0.0
    %1468 = vmatpush.msra.mxu0 0.0
    %1469 = vmatpush.msra.mxu0 0.0
    %1470 = vmatpush.msra.mxu0 0.0
    %1471 = vmatpush.msra.mxu0 0.0
    %1472 = vmatpush.msra.mxu0 0.0
    %1473 = vmatpush.msra.mxu0 0.0
    %1474 = vmatpush.msra.mxu0 0.0
    %1475 = vmatpush.msra.mxu0 0.0
    %1476 = vmatpush.msra.mxu0 0.0
    %1477 = vmatpush.msra.mxu0 0.0
    %1478 = vmatpush.msra.mxu0 %v1458
    %1479 = vmatmul.f32.gmra.mxu0 %v1461
    %v1480 = vpop.f32.mrf.mxu0
    %v1481 = vadd.f32 0.0, %v1480
    %1482 = vdwg.mxu0
    %1483 = vrot.lane.b32.xlu0 %v1013, 104
    %v1484 = vpop.permute.xlu0 %1483
    %1485 = vrot.lane.b32.xlu0 %v1013, 72
    %v1486 = vpop.permute.xlu0 %1485
    %v1487 = vsel %vm173, %v1484, 0
    %v1489 = vsel %vm173, %v1486, 0
    %1491 = vmatpush.xpose.msra.mxu0 0.0
    %1492 = vmatpush.xpose.msra.mxu0 0.0
    %1493 = vmatpush.xpose.msra.mxu0 0.0
    %1494 = vmatpush.xpose.msra.mxu0 0.0
    %1495 = vmatpush.xpose.msra.mxu0 0.0
    %1496 = vmatpush.xpose.msra.mxu0 0.0
    %1497 = vmatpush.xpose.msra.mxu0 0.0
    %1498 = vmatpush.xpose.msra.mxu0 0.0
    %1499 = vmatpush.xpose.msra.mxu0 0.0
    %1500 = vmatpush.xpose.msra.mxu0 0.0
    %1501 = vmatpush.xpose.msra.mxu0 0.0
    %1502 = vmatpush.xpose.msra.mxu0 0.0
    %1503 = vmatpush.xpose.msra.mxu0 0.0
    %1504 = vmatpush.xpose.msra.mxu0 0.0
    %1505 = vmatpush.xpose.msra.mxu0 0.0
    %1506 = vmatpush.xpose.msra.mxu0 %v1489
    %1507 = vmatmul.f32.gmra.mxu0 %v1487
    %v1508 = vpop.f32.mrf.mxu0
    %v1509 = vadd.f32 %v450, %v1508
    %1510 = vdwg.mxu0
    %v1511 = vsel %vm173, %v1509, -inf
    %1512 = vmax.xlane.f32.xlu0 %v1511
    %v1513 = vpop.xlane.xlu0 %1512
    %v1514 = vsub.f32 %v1509, %v1513
    %v1515 = vmul.f32 %v1514, 1.442695
    %v1516 = vpow.pop %v1515
    %v1517 = vsel %vm173, %v1516, 0.0
    %1518 = vadd.xlane.f32.xlu0 %v1517
    %v1519 = vpop.xlane.xlu0 %1518
    %v1520 = vrcp.pop %v1519
    %v1521 = vmul.f32 %v1516, %v1520
    %1522 = vrot.lane.b32.xlu0 %v1013, 40
    %v1523 = vpop.permute.xlu0 %1522
    %v1526 = vsel %vm173, %v1521, 0
    %1528 = vmatpush.msra.mxu0 0.0
    %1529 = vmatpush.msra.mxu0 0.0
    %1530 = vmatpush.msra.mxu0 0.0
    %1531 = vmatpush.msra.mxu0 0.0
    %1532 = vmatpush.msra.mxu0 0.0
    %1533 = vmatpush.msra.mxu0 0.0
    %1534 = vmatpush.msra.mxu0 0.0
    %1535 = vmatpush.msra.mxu0 0.0
    %1536 = vmatpush.msra.mxu0 0.0
    %1537 = vmatpush.msra.mxu0 0.0
    %1538 = vmatpush.msra.mxu0 0.0
    %1539 = vmatpush.msra.mxu0 0.0
    %1540 = vmatpush.msra.mxu0 0.0
    %1541 = vmatpush.msra.mxu0 0.0
    %1542 = vmatpush.msra.mxu0 0.0
    %1543 = vmatpush.msra.mxu0 %v1523
    %1544 = vmatmul.f32.gmra.mxu0 %v1526
    %v1545 = vpop.f32.mrf.mxu0
    %v1546 = vadd.f32 0.0, %v1545
    %1547 = vdwg.mxu0
    %1549 = vrot.lane.b32.xlu0 %v1416, 8
    %v1550 = vpop.permute.xlu0 %1549
    %1553 = vrot.lane.b32.xlu0 %v1481, 16
    %v1554 = vpop.permute.xlu0 %1553
    %1557 = vrot.lane.b32.xlu0 %v1546, 24
    %v1558 = vpop.permute.xlu0 %1557
    %v1560 = vsel %vm173, %v1351, %v1550
    %v1561 = vsel %vm443, %v1560, %v1554
    %v1562 = vsel %vm445, %v1561, %v1558
    %s1563 = scalar_lea.vmem %s6, 32
    %v1564 = vld [vmem:[%s1563] sm:$0xff]
    %v1565 = vld [vmem:[%s1563 + $0x8] sm:$0xff]
    %v1566 = vld [vmem:[%s1563 + $0x10] sm:$0xff]
    %v1567 = vld [vmem:[%s1563 + $0x18] sm:$0xff]
    %s1568 = scalar_lea.vmem %s7, 1
    %v1569 = vld [vmem:[%s1568] sm:$0x1]
    %v1571 = vperm.slane %v1569, 0
    %v1574 = vsel %vm67, %v1288, 0
    %v1577 = vsel %vm67, %v1562, 0
    %1579 = vmatpush.msra.mxu0 0.0
    %1580 = vmatpush.msra.mxu0 0.0
    %1581 = vmatpush.msra.mxu0 0.0
    %1582 = vmatpush.msra.mxu0 0.0
    %1583 = vmatpush.msra.mxu0 0.0
    %1584 = vmatpush.msra.mxu0 0.0
    %1585 = vmatpush.msra.mxu0 0.0
    %1586 = vmatpush.msra.mxu0 0.0
    %1587 = vmatpush.msra.mxu0 0.0
    %1588 = vmatpush.msra.mxu0 0.0
    %1589 = vmatpush.msra.mxu0 0.0
    %1590 = vmatpush.msra.mxu0 0.0
    %1591 = vmatpush.msra.mxu0 %v1567
    %1592 = vmatpush.msra.mxu0 %v1566
    %1593 = vmatpush.msra.mxu0 %v1565
    %1594 = vmatpush.msra.mxu0 %v1564
    %1595 = vmatmul.f32.gmra.mxu0 %v1574
    %v1596 = vpop.f32.mrf.mxu0
    %v1597 = vadd.f32 %v1571, %v1596
    %1598 = vmatmul.f32.gmra.mxu0 %v1577
    %v1599 = vpop.f32.mrf.mxu0
    %v1600 = vadd.f32 %v1571, %v1599
    %1601 = vdwg.mxu0
    %v1602 = vadd.f32 %v1597, %v974
    %v1603 = vadd.f32 %v1600, %v975
    %s1604 = scalar_lea.vmem %s8, 1
    %v1605 = vld [vmem:[%s1604] sm:$0x1]
    %s1606 = scalar_lea.vmem %s9, 1
    %v1607 = vld [vmem:[%s1606] sm:$0x1]
    %v1608 = vsel %vm67, %v1602, 0.0
    %1609 = vadd.xlane.f32.xlu0 %v1608
    %v1610 = vpop.xlane.xlu0 %1609
    %v1611 = vsel %vm67, %v1603, 0.0
    %1612 = vadd.xlane.f32.xlu0 %v1611
    %v1613 = vpop.xlane.xlu0 %1612
    %v1614 = vmul.f32 %v1610, %v80
    %v1615 = vmul.f32 %v1613, %v80
    %v1616 = vsub.f32 %v1602, %v1614
    %v1617 = vsub.f32 %v1603, %v1615
    %v1618 = vmul.f32 %v1616, %v1616
    %v1619 = vmul.f32 %v1617, %v1617
    %v1620 = vsel %vm67, %v1618, 0.0
    %1621 = vadd.xlane.f32.xlu0 %v1620
    %v1622 = vpop.xlane.xlu0 %1621
    %v1623 = vsel %vm67, %v1619, 0.0
    %1624 = vadd.xlane.f32.xlu0 %v1623
    %v1625 = vpop.xlane.xlu0 %1624
    %v1626 = vmul.f32 %v1622, %v80
    %v1627 = vmul.f32 %v1625, %v80
    %v1628 = vadd.f32 %v1626, 1e-12
    %v1629 = vadd.f32 %v1627, 1e-12
    %v1630 = vrsqrt.pop %v1628
    %v1631 = vmul.f32 %v1630, %v1628
    %v1632 = vmul.f32 %v1631, %v1630
    %v1633 = vmul.f32 0.5, %v1632
    %v1634 = vsub.f32 1.5, %v1633
    %v1635 = vmul.f32 %v1630, %v1634
    %vm1636 = vweird.f32 %v1628
    %vm1637 = vweird.f32 %v1630
    %vm1638 = vmor %vm1636, %vm1637
    %v1639 = vsel %vm1638, %v1630, %v1635
    %v1640 = vrsqrt.pop %v1629
    %v1641 = vmul.f32 %v1640, %v1629
    %v1642 = vmul.f32 %v1641, %v1640
    %v1643 = vmul.f32 0.5, %v1642
    %v1644 = vsub.f32 1.5, %v1643
    %v1645 = vmul.f32 %v1640, %v1644
    %vm1646 = vweird.f32 %v1629
    %vm1647 = vweird.f32 %v1640
    %vm1648 = vmor %vm1646, %vm1647
    %v1649 = vsel %vm1648, %v1640, %v1645
    %v1650 = vmul.f32 %v1616, %v1639
    %v1651 = vmul.f32 %v1617, %v1649
    %v1653 = vperm.slane %v1605, 0
    %v1655 = vmul.f32 %v1650, %v1653
    %v1656 = vmul.f32 %v1651, %v1653
    %v1658 = vperm.slane %v1607, 0
    %v1660 = vadd.f32 %v1655, %v1658
    %v1661 = vadd.f32 %v1656, %v1658
    %s1662 = scalar_lea.vmem %s10, 32
    %v1663 = vld [vmem:[%s1662] sm:$0xff]
    %v1664 = vld [vmem:[%s1662 + $0x8] sm:$0xff]
    %v1665 = vld [vmem:[%s1662 + $0x10] sm:$0xff]
    %v1666 = vld [vmem:[%s1662 + $0x18] sm:$0xff]
    %s1667 = scalar_lea.vmem %s11, 1
    %v1668 = vld [vmem:[%s1667] sm:$0x1]
    %v1670 = vperm.slane %v1668, 0
    %v1673 = vsel %vm67, %v1660, 0
    %v1676 = vsel %vm67, %v1661, 0
    %1678 = vmatpush.msra.mxu0 0.0
    %1679 = vmatpush.msra.mxu0 0.0
    %1680 = vmatpush.msra.mxu0 0.0
    %1681 = vmatpush.msra.mxu0 0.0
    %1682 = vmatpush.msra.mxu0 0.0
    %1683 = vmatpush.msra.mxu0 0.0
    %1684 = vmatpush.msra.mxu0 0.0
    %1685 = vmatpush.msra.mxu0 0.0
    %1686 = vmatpush.msra.mxu0 0.0
    %1687 = vmatpush.msra.mxu0 0.0
    %1688 = vmatpush.msra.mxu0 0.0
    %1689 = vmatpush.msra.mxu0 0.0
    %1690 = vmatpush.msra.mxu0 %v1666
    %1691 = vmatpush.msra.mxu0 %v1665
    %1692 = vmatpush.msra.mxu0 %v1664
    %1693 = vmatpush.msra.mxu0 %v1663
    %1694 = vmatmul.f32.gmra.mxu0 %v1673
    %v1695 = vpop.f32.mrf.mxu0
    %v1696 = vadd.f32 %v1670, %v1695
    %1697 = vmatmul.f32.gmra.mxu0 %v1676
    %v1698 = vpop.f32.mrf.mxu0
    %v1699 = vadd.f32 %v1670, %v1698
    %1700 = vdwg.mxu0
    %v1701 = vmul.f32 %v1696, 0.5
    %v1702 = vmul.f32 %v1699, 0.5
    %v1703 = vmul.f32 %v1696, 0.044715
    %v1704 = vmul.f32 %v1699, 0.044715
    %v1705 = vmul.f32 %v1703, %v1696
    %v1706 = vmul.f32 %v1704, %v1699
    %v1707 = vmul.f32 %v1705, %v1696
    %v1708 = vmul.f32 %v1706, %v1699
    %v1709 = vadd.f32 %v1696, %v1707
    %v1710 = vadd.f32 %v1699, %v1708
    %v1711 = vmul.f32 %v1709, 0.7978846
    %v1712 = vmul.f32 %v1710, 0.7978846
    %v1713 = vtanh.pop %v1711
    %v1714 = vtanh.pop %v1712
    %v1715 = vadd.f32 %v1713, 1.0
    %v1716 = vadd.f32 %v1714, 1.0
    %v1717 = vmul.f32 %v1701, %v1715
    %v1718 = vmul.f32 %v1702, %v1716
    %s1719 = scalar_lea.vmem %s12, 64
    %v1720 = vld [vmem:[%s1719] sm:$0xff]
    %v1721 = vld [vmem:[%s1719 + $0x8] sm:$0xff]
    %v1722 = vld [vmem:[%s1719 + $0x10] sm:$0xff]
    %v1723 = vld [vmem:[%s1719 + $0x18] sm:$0xff]
    %v1724 = vld [vmem:[%s1719 + $0x20] sm:$0xff]
    %v1725 = vld [vmem:[%s1719 + $0x28] sm:$0xff]
    %v1726 = vld [vmem:[%s1719 + $0x30] sm:$0xff]
    %v1727 = vld [vmem:[%s1719 + $0x38] sm:$0xff]
    %s1728 = scalar_lea.vmem %s13, 1
    %v1729 = vld [vmem:[%s1728] sm:$0x1]
    %v1731 = vperm.slane %v1729, 0
    %v1734 = vsel %vm888, %v1717, 0
    %v1737 = vsel %vm888, %v1718, 0
    %1739 = vmatpush.msra.mxu0 0.0
    %1740 = vmatpush.msra.mxu0 0.0
    %1741 = vmatpush.msra.mxu0 0.0
    %1742 = vmatpush.msra.mxu0 0.0
    %1743 = vmatpush.msra.mxu0 0.0
    %1744 = vmatpush.msra.mxu0 0.0
    %1745 = vmatpush.msra.mxu0 0.0
    %1746 = vmatpush.msra.mxu0 0.0
    %1747 = vmatpush.msra.mxu0 %v1727
    %1748 = vmatpush.msra.mxu0 %v1726
    %1749 = vmatpush.msra.mxu0 %v1725
    %1750 = vmatpush.msra.mxu0 %v1724
    %1751 = vmatpush.msra.mxu0 %v1723
    %1752 = vmatpush.msra.mxu0 %v1722
    %1753 = vmatpush.msra.mxu0 %v1721
    %1754 = vmatpush.msra.mxu0 %v1720
    %1755 = vmatmul.f32.gmra.mxu0 %v1734
    %v1756 = vpop.f32.mrf.mxu0
    %v1757 = vadd.f32 %v1731, %v1756
    %1758 = vmatmul.f32.gmra.mxu0 %v1737
    %v1759 = vpop.f32.mrf.mxu0
    %v1760 = vadd.f32 %v1731, %v1759
    %1761 = vdwg.mxu0
    %v1762 = vadd.f32 %v1757, %v1660
    %v1763 = vadd.f32 %v1760, %v1661
    %s1764 = scalar_lea.vmem %s14, 1
    %v1765 = vld [vmem:[%s1764] sm:$0x1]
    %s1766 = scalar_lea.vmem %s15, 1
    %v1767 = vld [vmem:[%s1766] sm:$0x1]
    %v1768 = vsel %vm67, %v1762, 0.0
    %1769 = vadd.xlane.f32.xlu0 %v1768
    %v1770 = vpop.xlane.xlu0 %1769
    %v1771 = vsel %vm67, %v1763, 0.0
    %1772 = vadd.xlane.f32.xlu0 %v1771
    %v1773 = vpop.xlane.xlu0 %1772
    %v1774 = vmul.f32 %v1770, %v80
    %v1775 = vmul.f32 %v1773, %v80
    %v1776 = vsub.f32 %v1762, %v1774
    %v1777 = vsub.f32 %v1763, %v1775
    %v1778 = vmul.f32 %v1776, %v1776
    %v1779 = vmul.f32 %v1777, %v1777
    %v1780 = vsel %vm67, %v1778, 0.0
    %1781 = vadd.xlane.f32.xlu0 %v1780
    %v1782 = vpop.xlane.xlu0 %1781
    %v1783 = vsel %vm67, %v1779, 0.0
    %1784 = vadd.xlane.f32.xlu0 %v1783
    %v1785 = vpop.xlane.xlu0 %1784
    %v1786 = vmul.f32 %v1782, %v80
    %v1787 = vmul.f32 %v1785, %v80
    %v1788 = vadd.f32 %v1786, 1e-12
    %v1789 = vadd.f32 %v1787, 1e-12
    %v1790 = vrsqrt.pop %v1788
    %v1791 = vmul.f32 %v1790, %v1788
    %v1792 = vmul.f32 %v1791, %v1790
    %v1793 = vmul.f32 0.5, %v1792
    %v1794 = vsub.f32 1.5, %v1793
    %v1795 = vmul.f32 %v1790, %v1794
    %vm1796 = vweird.f32 %v1788
    %vm1797 = vweird.f32 %v1790
    %vm1798 = vmor %vm1796, %vm1797
    %v1799 = vsel %vm1798, %v1790, %v1795
    %v1800 = vrsqrt.pop %v1789
    %v1801 = vmul.f32 %v1800, %v1789
    %v1802 = vmul.f32 %v1801, %v1800
    %v1803 = vmul.f32 0.5, %v1802
    %v1804 = vsub.f32 1.5, %v1803
    %v1805 = vmul.f32 %v1800, %v1804
    %vm1806 = vweird.f32 %v1789
    %vm1807 = vweird.f32 %v1800
    %vm1808 = vmor %vm1806, %vm1807
    %v1809 = vsel %vm1808, %v1800, %v1805
    %v1810 = vmul.f32 %v1776, %v1799
    %v1811 = vmul.f32 %v1777, %v1809
    %v1813 = vperm.slane %v1765, 0
    %v1815 = vmul.f32 %v1810, %v1813
    %v1816 = vmul.f32 %v1811, %v1813
    %v1818 = vperm.slane %v1767, 0
    %v1820 = vadd.f32 %v1815, %v1818
    %v1821 = vadd.f32 %v1816, %v1818
    %1822 = vst.msk [vmem:[#allocation2] sm:$0xff] %vm67, %v1820
    %1823 = vst.msk [vmem:[#allocation2 + $0x8] sm:$0xff] %vm67, %v1821
    %v1825 = vrot.slane %v1821, 7
    %vm1827 = vcmask 1040384
    %v1828 = vsel %vm1827, %v1820, %v1825
    %v1829 = vld [vmem:[%s16] sm:$0xff]
    %v1830 = vld [vmem:[%s16 + $0x8] sm:$0xff]
    %v1831 = vld [vmem:[%s16 + $0x10] sm:$0xff]
    %v1832 = vld [vmem:[%s16 + $0x18] sm:$0xff]
    %v1833 = vld [vmem:[%s17] sm:$0x1]
    %v1835 = vperm.slane %v1833, 0
    %v1838 = vsel %vm67, %v1828, 0
    %1840 = vmatpush.msra.mxu0 0.0
    %1841 = vmatpush.msra.mxu0 0.0
    %1842 = vmatpush.msra.mxu0 0.0
    %1843 = vmatpush.msra.mxu0 0.0
    %1844 = vmatpush.msra.mxu0 0.0
    %1845 = vmatpush.msra.mxu0 0.0
    %1846 = vmatpush.msra.mxu0 0.0
    %1847 = vmatpush.msra.mxu0 0.0
    %1848 = vmatpush.msra.mxu0 0.0
    %1849 = vmatpush.msra.mxu0 0.0
    %1850 = vmatpush.msra.mxu0 0.0
    %1851 = vmatpush.msra.mxu0 0.0
    %1852 = vmatpush.msra.mxu0 %v1832
    %1853 = vmatpush.msra.mxu0 %v1831
    %1854 = vmatpush.msra.mxu0 %v1830
    %1855 = vmatpush.msra.mxu0 %v1829
    %1856 = vmatmul.f32.gmra.mxu0 %v1838
    %v1857 = vpop.f32.mrf.mxu0
    %v1858 = vadd.f32 %v1835, %v1857
    %1859 = vdwg.mxu0
    %v1860 = vtanh.pop %v1858
    %vm1861 = vcmask 254976
    %1862 = vst.msk [vmem:[#allocation4] sm:$0x3] %vm1861, %v1860
    // Predicated region
    $region74: #{encoder_forward.1} parent=1 // pred_check
      _
    $region75: #{encoder_forward.1} parent=1 // pred_check_branch
      %1864 = sbr.rel (0) target = $region77
    $region76: #{encoder_forward.1} parent=1 // pred_region
      %1866 = vsyncadd [#allocation3], 0
      %s1867 = sshll.u32 [#allocation2], 4
      %s1868 = int_to_ptr.vmem [resolvable:$true] %s1867
      %s1869 = sshll.u32 %s18, 4
      %s1870 = int_to_ptr.hbm [resolvable:$true] %s1869
      %1875 = dma.vmem_to_hbm [thread:$0]  %s1868, 256, %s1870, [#allocation3], 128, 128, 8
    $region77: #{encoder_forward.1} parent=1 // pred_fallthru
      _
    // Predicated region
    $region78: #{encoder_forward.1} parent=1 // pred_check
      _
    $region79: #{encoder_forward.1} parent=1 // pred_check_branch
      %1877 = sbr.rel (0) target = $region81
    $region80: #{encoder_forward.1} parent=1 // pred_region
      %1879 = vsyncadd [#allocation5], 0
      %s1881 = sshll.u32 [#allocation4], 4
      %s1882 = int_to_ptr.vmem [resolvable:$true] %s1881
      %s1883 = sshll.u32 %s19, 4
      %s1884 = int_to_ptr.hbm [resolvable:$true] %s1883
      %1886 = dma.vmem_to_hbm [thread:$0]  %s1882, 32, %s1884, [#allocation5]
    $region81: #{encoder_forward.1} parent=1 // pred_fallthru
      _
    // Predicated region
    $region82: #{encoder_forward.1} parent=1 // pred_check
      _
    $region83: #{encoder_forward.1} parent=1 // pred_check_branch
      %1888 = sbr.rel (0) target = $region85
    $region84: #{encoder_forward.1} parent=1 // pred_region
      %1890 = dma.done [#allocation3], 256
    $region85: #{encoder_forward.1} parent=1 // pred_fallthru
      _
    // Predicated region
    $region86: #{encoder_forward.1} parent=1 // pred_check
      _
    $region87: #{encoder_forward.1} parent=1 // pred_check_branch
      %1892 = sbr.rel (0) target = $region89
    $region88: #{encoder_forward.1} parent=1 // pred_region
      %1894 = dma.done [#allocation5], 32
    $region89: #{encoder_forward.1} parent=1 // pred_fallthru
      _
    %1895 = vsyncpa [#allocation3], 1
    %1896 = vsyncpa [#allocation5], 1

</llo_original>
